<compile_context>
chip_gen: v7x
topology: tpu7x:2x2x1
jax: 0.10.0
libtpu: 0.0.40
codegen_flags: <defaults>
</compile_context>

<pallas_src>
import functools

import numpy as np
import jax
import jax.numpy as jnp
from jax.experimental import pallas as pl
from jax.experimental.pallas import tpu as pltpu


def _round_up(a, m):
    return ((a + m - 1) // m) * m


def _cdiv(a, b):
    return (a + b - 1) // b


# ----------------------------------------------------------------------------
# Glue: reflect + (-1)^w phase padding along H, flatten (H,W) -> L and append
# `extra` zero lanes, all in ONE jnp.concatenate (single HBM materialization).
# Applied to the real and imaginary planes separately (the phase is real).
# ----------------------------------------------------------------------------
def _dfs_pad_flat(xp, pad, extra):
    # TODO(synk): the ew_padding != 0 branch of spectral_dfs_padding is never
    # used by SlowComplexConv1d.forward (always ew_padding=0), so it is omitted.
    b, c, h, w = xp.shape
    if pad > 0:
        phase = jnp.ones((w,), xp.dtype).at[1::2].set(-1.0)
        # torch reflect: top rows = x[pad],...,x[1]; bottom = x[h-2],...,x[h-1-pad]
        top = (xp[:, :, 1:pad + 1, :][:, :, ::-1, :] * phase).reshape(b, c, pad * w)
        bot = (xp[:, :, h - 1 - pad:h - 1, :][:, :, ::-1, :] * phase).reshape(b, c, pad * w)
        pieces = [top, xp.reshape(b, c, h * w), bot]
    else:
        pieces = [xp.reshape(b, c, h * w)]
    if extra > 0:
        pieces.append(jnp.zeros((b, c, extra), xp.dtype))
    return jnp.concatenate(pieces, axis=2) if len(pieces) > 1 else pieces[0]


# ----------------------------------------------------------------------------
# Pallas kernel: one fused 2x2 block-form MXU matmul per (batch, L-tile) step.
#   xrm/xim : (1, C_in, ltile)      main tile of flat padded real/imag plane
#   xrh/xih : (1, C_in, halo_pad)   halo lanes right after the tile
#   w       : (2*C_out, 2*K*C_in)   [[Wr,-Wi],[Wi,Wr]], block-diag over groups
#   o       : (1, 2*C_out, ltile)   [out_r ; out_i]
# ----------------------------------------------------------------------------
def _complex_conv_kernel(xrm_ref, xim_ref, xrh_ref, xih_ref, w_ref, o_ref,
                         win_r, win_i, *, kernel_size, w_cols, ltile):
    # Assemble the overlapped window (main || halo) once in VMEM scratch with
    # aligned stores; tap reads below are cheap static slices of this scratch.
    win_r[:, :ltile] = xrm_ref[0]
    win_r[:, ltile:] = xrh_ref[0]
    win_i[:, :ltile] = xim_ref[0]
    win_i[:, ltile:] = xih_ref[0]

    # Static tap slices at lane offsets t*W, stacked along sublanes:
    #   Z = [xr tap0; ...; xr tapK-1; xi tap0; ...; xi tapK-1]  (2*K*C_in, ltile)
    taps = [win_r[:, t * w_cols:t * w_cols + ltile] for t in range(kernel_size)]
    taps += [win_i[:, t * w_cols:t * w_cols + ltile] for t in range(kernel_size)]
    z = jnp.concatenate(taps, axis=0) if len(taps) > 1 else taps[0]

    # 2x2 real block form: one MXU contraction of depth 2*K*C_in; the result is
    # directly [out_r ; out_i] with no VPU add/sub epilogue.
    # TODO(synk): relax precision (HIGH / bf16 operands) once channel counts
    # make this MXU-bound; re-validate the 1e-3 tolerance then.
    p = jnp.dot(w_ref[...], z, preferred_element_type=jnp.float32,
                precision=jax.lax.Precision.HIGHEST)       # (2*C_out, ltile)
    o_ref[0, :, :] = p


# ----------------------------------------------------------------------------
# Wrapper: SlowComplexConv1d.forward
# ----------------------------------------------------------------------------
@functools.partial(jax.jit, static_argnames=("groups", "ltile_max"))
def slow_complex_conv1d(x, weight, *, groups, ltile_max=4096):
    """x: complex64 (B, C_in, H, W); weight: complex64 (C_out, C_in//groups, K)."""
    B, C_in, H, W = x.shape
    C_out, Cg, K = weight.shape
    assert C_in == Cg * groups and C_out % groups == 0
    pad = K // 2
    assert pad < H, "reflect padding requires kernel_size//2 < H"

    Hp = H + 2 * pad
    Ho = Hp - K + 1
    L = Ho * W
    halo = (K - 1) * W                           # overlap lanes between L tiles
    halo_pad = max(128, _round_up(halo, 128))    # halo block + ltile granularity

    # --- L tiling: lane-dense, bounded by an explicit per-step VMEM budget ---
    per_lane = (4 * C_in + 4 * C_out             # double-buffered main in + out
                + 4 * K * C_in                   # z + tap-slice temporaries
                + 2 * C_out)                     # p
    fixed = (8 * C_in * halo_pad                 # double-buffered halo inputs
             + 4 * C_out * 2 * K * C_in)         # double-buffered weight block
    budget_words = (32 * 1024 * 1024) // 4       # ~32 MiB: safe on v7x's 64 MiB VMEM
    cap = (budget_words - fixed) // per_lane
    cap = max(halo_pad, min(ltile_max, (cap // halo_pad) * halo_pad))
    ltile = _round_up(L, halo_pad) if L <= cap else cap
    n_l = _cdiv(L, ltile)
    if B * n_l < 8:                              # keep >= 8 parallel steps (v7x 2 TCs)
        nl_tgt = min(_cdiv(8, B), _cdiv(L, halo_pad))
        lt2 = _round_up(_cdiv(L, nl_tgt), halo_pad)
        if lt2 >= 1024:                          # only if tiles stay fat enough
            ltile, n_l = lt2, _cdiv(L, lt2)
    l_pad = n_l * ltile
    src_len = l_pad + halo_pad
    extra = src_len - Hp * W                     # >= 0 by construction
    halo_blocks = ltile // halo_pad

    # --- fused pad + phase + flatten (single concatenate per plane) ----------
    xr = _dfs_pad_flat(jnp.real(x).astype(jnp.float32), pad, extra)   # (B, C_in, src_len)
    xi = _dfs_pad_flat(jnp.imag(x).astype(jnp.float32), pad, extra)

    # --- 2x2 block-form, tap-fused, group-block-diagonal weight --------------
    # TODO(synk): for large `groups` the dense block-diagonal weight wastes
    # O(groups) MXU work; add a groups grid axis / blocked weight tiles instead.
    Cog = C_out // groups
    w_t = jnp.transpose(weight, (0, 2, 1))                    # (C_out, K, Cg)
    wr_full = jnp.zeros((C_out, K, C_in), jnp.float32)
    wi_full = jnp.zeros((C_out, K, C_in), jnp.float32)
    for g in range(groups):
        rs, re = g * Cog, (g + 1) * Cog
        cs, ce = g * Cg, (g + 1) * Cg
        wr_full = wr_full.at[rs:re, :, cs:ce].set(jnp.real(w_t[rs:re]).astype(jnp.float32))
        wi_full = wi_full.at[rs:re, :, cs:ce].set(jnp.imag(w_t[rs:re]).astype(jnp.float32))
    wr_big = wr_full.reshape(C_out, K * C_in)                  # col = t*C_in + ch
    wi_big = wi_full.reshape(C_out, K * C_in)
    w_blk = jnp.concatenate(
        [jnp.concatenate([wr_big, -wi_big], axis=1),
         jnp.concatenate([wi_big, wr_big], axis=1)], axis=0)   # (2*C_out, 2*K*C_in)

    kernel = functools.partial(_complex_conv_kernel, kernel_size=K, w_cols=W,
                               ltile=ltile)
    out = pl.pallas_call(
        kernel,
        out_shape=jax.ShapeDtypeStruct((B, 2 * C_out, l_pad), jnp.float32),
        grid=(B, n_l),
        in_specs=[
            pl.BlockSpec((1, C_in, ltile), lambda b, j: (b, 0, j)),
            pl.BlockSpec((1, C_in, ltile), lambda b, j: (b, 0, j)),
            pl.BlockSpec((1, C_in, halo_pad),
                         lambda b, j, hb=halo_blocks: (b, 0, (j + 1) * hb)),
            pl.BlockSpec((1, C_in, halo_pad),
                         lambda b, j, hb=halo_blocks: (b, 0, (j + 1) * hb)),
            pl.BlockSpec((2 * C_out, 2 * K * C_in), lambda b, j: (0, 0)),
        ],
        out_specs=pl.BlockSpec((1, 2 * C_out, ltile), lambda b, j: (b, 0, j)),
        scratch_shapes=[pltpu.VMEM((C_in, ltile + halo_pad), jnp.float32),
                        pltpu.VMEM((C_in, ltile + halo_pad), jnp.float32)],
        compiler_params=pltpu.CompilerParams(
            dimension_semantics=("parallel", "parallel"),
            vmem_limit_bytes=48 * 1024 * 1024),
    )(xr, xi, xr, xi, w_blk)   # same plane passed twice: main block + halo block

    # TODO(synk): low priority — emitting an interleaved layout from the kernel
    # would avoid this extra complex-pack HBM pass.
    out_c = jax.lax.complex(out[:, :C_out, :L], out[:, C_out:, :L])
    return out_c.reshape(B, C_out, Ho, W)


# ----------------------------------------------------------------------------
# Independent numpy reference (complex128)
# ----------------------------------------------------------------------------
def _reference(x, weight, groups):
    x = np.asarray(x).astype(np.complex128)
    w = np.asarray(weight).astype(np.complex128)
    B, C_in, H, W = x.shape
    C_out, Cg, K = w.shape
    pad = K // 2
    if pad > 0:
        out = np.pad(x, ((0, 0), (0, 0), (pad, pad), (0, 0)), mode="reflect")
        phase = np.ones((W,), dtype=np.complex128)
        phase[1::2] = -1
        out[:, :, :pad] *= phase
        out[:, :, -pad:] *= phase
    else:
        out = x
    Hp = H + 2 * pad
    Ho = Hp - K + 1
    Cog = C_out // groups
    ref = np.zeros((B, C_out, Ho, W), dtype=np.complex128)
    for g in range(groups):
        for o in range(Cog):
            co = g * Cog + o
            for t in range(K):
                for c in range(Cg):
                    ref[:, co] += w[co, c, t] * out[:, g * Cg + c, t:t + Ho, :]
    return ref


if __name__ == "__main__":
    B, C_in, C_out, H, W, K, groups = 2, 8, 8, 16, 16, 3, 2
    Cg = C_in // groups

    key = jax.random.PRNGKey(0)
    k1, k2, k3, k4 = jax.random.split(key, 4)
    x = (jax.random.normal(k1, (B, C_in, H, W), dtype=jnp.float32)
         + 1j * jax.random.normal(k2, (B, C_in, H, W), dtype=jnp.float32)).astype(jnp.complex64)

    # Deterministic "Conv1d(dtype=cfloat)"-shaped weight: (C_out, C_in//groups, K)
    bound = 1.0 / np.sqrt(Cg * K)
    weight = (jax.random.uniform(k3, (C_out, Cg, K), minval=-bound, maxval=bound)
              + 1j * jax.random.uniform(k4, (C_out, Cg, K), minval=-bound, maxval=bound)
              ).astype(jnp.complex64)

    out = slow_complex_conv1d(x, weight, groups=groups)
    out = jax.block_until_ready(out)

    ref = _reference(x, weight, groups)
    np.testing.assert_allclose(np.asarray(out), ref.astype(np.complex64),
                               rtol=1e-3, atol=1e-3)
    print("KERNEL_OK")
</pallas_src>

<mosaic_0001>
module attributes {stable_mosaic.version = 11 : i64} {
  func.func @_complex_conv_kernel(%arg0: i32, %arg1: i32, %arg2: memref<1x8x256xf32, #tpu.memory_space<vmem>>, %arg3: memref<1x8x256xf32, #tpu.memory_space<vmem>>, %arg4: memref<1x8x128xf32, #tpu.memory_space<vmem>>, %arg5: memref<1x8x128xf32, #tpu.memory_space<vmem>>, %arg6: memref<16x48xf32, #tpu.memory_space<vmem>>, %arg7: memref<1x16x256xf32, #tpu.memory_space<vmem>>, %arg8: memref<8x384xf32, #tpu.memory_space<vmem>>, %arg9: memref<8x384xf32, #tpu.memory_space<vmem>>) attributes {dimension_semantics = [#tpu.dimension_semantics<parallel>, #tpu.dimension_semantics<parallel>], iteration_bounds = array<i64: 2, 1>, scalar_prefetch = 0 : i64, scratch_operands = 2 : i64, tpu.core_type = #tpu.core_type<tc>, window_params = [{transform_indices = @transform_0, window_bounds = array<i64: 1, 8, 256>}, {transform_indices = @transform_1, window_bounds = array<i64: 1, 8, 256>}, {transform_indices = @transform_2, window_bounds = array<i64: 1, 8, 128>}, {transform_indices = @transform_3, window_bounds = array<i64: 1, 8, 128>}, {pipeline_mode = #tpu.pipeline_mode<synchronous>, transform_indices = @transform_4, window_bounds = array<i64: 16, 48>}, {transform_indices = @transform_5, window_bounds = array<i64: 1, 16, 256>}]} {
    %c0 = arith.constant 0 : index
    %c0_0 = arith.constant 0 : index
    %c0_1 = arith.constant 0 : index
    %0 = vector.load %arg2[%c0, %c0_0, %c0_1] : memref<1x8x256xf32, #tpu.memory_space<vmem>>, vector<1x8x256xf32>
    %1 = vector.shape_cast %0 : vector<1x8x256xf32> to vector<8x256xf32>
    %c0_2 = arith.constant 0 : index
    %c0_3 = arith.constant 0 : index
    %2 = vector.load %arg8[%c0_2, %c0_3] : memref<8x384xf32, #tpu.memory_space<vmem>>, vector<8x256xf32>
    tpu.vector_store %arg8[%c0_2, %c0_3], %1 {strides = array<i32>} : memref<8x384xf32, #tpu.memory_space<vmem>>, vector<8x256xf32>,
    %c0_4 = arith.constant 0 : index
    %c0_5 = arith.constant 0 : index
    %c0_6 = arith.constant 0 : index
    %3 = vector.load %arg4[%c0_4, %c0_5, %c0_6] : memref<1x8x128xf32, #tpu.memory_space<vmem>>, vector<1x8x128xf32>
    %4 = vector.shape_cast %3 : vector<1x8x128xf32> to vector<8x128xf32>
    %c0_7 = arith.constant 0 : index
    %c256 = arith.constant 256 : index
    %5 = vector.load %arg8[%c0_7, %c256] : memref<8x384xf32, #tpu.memory_space<vmem>>, vector<8x128xf32>
    tpu.vector_store %arg8[%c0_7, %c256], %4 {strides = array<i32>} : memref<8x384xf32, #tpu.memory_space<vmem>>, vector<8x128xf32>,
    %c0_8 = arith.constant 0 : index
    %c0_9 = arith.constant 0 : index
    %c0_10 = arith.constant 0 : index
    %6 = vector.load %arg3[%c0_8, %c0_9, %c0_10] : memref<1x8x256xf32, #tpu.memory_space<vmem>>, vector<1x8x256xf32>
    %7 = vector.shape_cast %6 : vector<1x8x256xf32> to vector<8x256xf32>
    %c0_11 = arith.constant 0 : index
    %c0_12 = arith.constant 0 : index
    %8 = vector.load %arg9[%c0_11, %c0_12] : memref<8x384xf32, #tpu.memory_space<vmem>>, vector<8x256xf32>
    tpu.vector_store %arg9[%c0_11, %c0_12], %7 {strides = array<i32>} : memref<8x384xf32, #tpu.memory_space<vmem>>, vector<8x256xf32>,
    %c0_13 = arith.constant 0 : index
    %c0_14 = arith.constant 0 : index
    %c0_15 = arith.constant 0 : index
    %9 = vector.load %arg5[%c0_13, %c0_14, %c0_15] : memref<1x8x128xf32, #tpu.memory_space<vmem>>, vector<1x8x128xf32>
    %10 = vector.shape_cast %9 : vector<1x8x128xf32> to vector<8x128xf32>
    %c0_16 = arith.constant 0 : index
    %c256_17 = arith.constant 256 : index
    %11 = vector.load %arg9[%c0_16, %c256_17] : memref<8x384xf32, #tpu.memory_space<vmem>>, vector<8x128xf32>
    tpu.vector_store %arg9[%c0_16, %c256_17], %10 {strides = array<i32>} : memref<8x384xf32, #tpu.memory_space<vmem>>, vector<8x128xf32>,
    %c0_18 = arith.constant 0 : index
    %c0_19 = arith.constant 0 : index
    %12 = vector.load %arg8[%c0_18, %c0_19] : memref<8x384xf32, #tpu.memory_space<vmem>>, vector<8x256xf32>
    %c0_20 = arith.constant 0 : index
    %c16 = arith.constant 16 : index
    %13 = vector.load %arg8[%c0_20, %c16] : memref<8x384xf32, #tpu.memory_space<vmem>>, vector<8x256xf32>
    %c0_21 = arith.constant 0 : index
    %c32 = arith.constant 32 : index
    %14 = vector.load %arg8[%c0_21, %c32] : memref<8x384xf32, #tpu.memory_space<vmem>>, vector<8x256xf32>
    %c0_22 = arith.constant 0 : index
    %c0_23 = arith.constant 0 : index
    %15 = vector.load %arg9[%c0_22, %c0_23] : memref<8x384xf32, #tpu.memory_space<vmem>>, vector<8x256xf32>
    %c0_24 = arith.constant 0 : index
    %c16_25 = arith.constant 16 : index
    %16 = vector.load %arg9[%c0_24, %c16_25] : memref<8x384xf32, #tpu.memory_space<vmem>>, vector<8x256xf32>
    %c0_26 = arith.constant 0 : index
    %c32_27 = arith.constant 32 : index
    %17 = vector.load %arg9[%c0_26, %c32_27] : memref<8x384xf32, #tpu.memory_space<vmem>>, vector<8x256xf32>
    %18 = tpu.concatenate %12, %13, %14, %15, %16, %17 in 0 : vector<8x256xf32>, vector<8x256xf32>, vector<8x256xf32>, vector<8x256xf32>, vector<8x256xf32>, vector<8x256xf32> -> vector<48x256xf32>
    %c0_28 = arith.constant 0 : index
    %c0_29 = arith.constant 0 : index
    %19 = vector.load %arg6[%c0_28, %c0_29] : memref<16x48xf32, #tpu.memory_space<vmem>>, vector<16x48xf32>
    %cst = arith.constant dense<0.000000e+00> : vector<16x256xf32>
    %20 = tpu.matmul %19, %18, %cst {dimension_numbers = #tpu.dot_dimension_numbers<[1], [0], [0], [1], [0, 0, 1, 1], [], []>, precision = #tpu.contract_precision<fp32>} : vector<16x48xf32>, vector<48x256xf32>, vector<16x256xf32> -> vector<16x256xf32>
    %c0_30 = arith.constant 0 : index
    %c0_31 = arith.constant 0 : index
    %c0_32 = arith.constant 0 : index
    %21 = vector.load %arg7[%c0_30, %c0_31, %c0_32] : memref<1x16x256xf32, #tpu.memory_space<vmem>>, vector<1x16x256xf32>
    %22 = vector.shape_cast %21 : vector<1x16x256xf32> to vector<16x256xf32>
    %23 = vector.shape_cast %20 : vector<16x256xf32> to vector<1x16x256xf32>
    tpu.vector_store %arg7[%c0_30, %c0_31, %c0_32], %23 {strides = array<i32>} : memref<1x16x256xf32, #tpu.memory_space<vmem>>, vector<1x16x256xf32>,
    return
  }
  func.func @transform_0(%arg0: i32, %arg1: i32) -> (i32, i32, i32) {
    %c0_i32 = arith.constant 0 : i32
    %c0_i32_0 = arith.constant 0 : i32
    return %arg0, %c0_i32, %arg1 : i32, i32, i32
  }
  func.func @transform_1(%arg0: i32, %arg1: i32) -> (i32, i32, i32) {
    %c0_i32 = arith.constant 0 : i32
    %c0_i32_0 = arith.constant 0 : i32
    return %arg0, %c0_i32, %arg1 : i32, i32, i32
  }
  func.func @transform_2(%arg0: i32, %arg1: i32) -> (i32, i32, i32) {
    %c1_i32 = arith.constant 1 : i32
    %0 = arith.addi %arg1, %c1_i32 : i32
    %c2_i32 = arith.constant 2 : i32
    %1 = arith.muli %0, %c2_i32 : i32
    %c0_i32 = arith.constant 0 : i32
    %c0_i32_0 = arith.constant 0 : i32
    return %arg0, %c0_i32, %1 : i32, i32, i32
  }
  func.func @transform_3(%arg0: i32, %arg1: i32) -> (i32, i32, i32) {
    %c1_i32 = arith.constant 1 : i32
    %0 = arith.addi %arg1, %c1_i32 : i32
    %c2_i32 = arith.constant 2 : i32
    %1 = arith.muli %0, %c2_i32 : i32
    %c0_i32 = arith.constant 0 : i32
    %c0_i32_0 = arith.constant 0 : i32
    return %arg0, %c0_i32, %1 : i32, i32, i32
  }
  func.func @transform_4(%arg0: i32, %arg1: i32) -> (i32, i32) {
    %c0_i32 = arith.constant 0 : i32
    %c0_i32_0 = arith.constant 0 : i32
    %c0_i32_1 = arith.constant 0 : i32
    return %c0_i32, %c0_i32_0 : i32, i32
  }
  func.func @transform_5(%arg0: i32, %arg1: i32) -> (i32, i32, i32) {
    %c0_i32 = arith.constant 0 : i32
    %c0_i32_0 = arith.constant 0 : i32
    return %arg0, %c0_i32, %arg1 : i32, i32, i32
  }
}

</mosaic_0001>

<llo_original>
// kernel: custom-call
$region0: #{custom-call}
  %s0 = inlined_call_operand.vmem [shape: c64[2,8,16,16], index: 0, kind: input, shape index: {}]
  %s1 = inlined_call_operand.vmem [shape: f32[2,8,16,16], index: 1, kind: output, shape index: {}]
  %v2 = vld [vmem:[%s0] sm:$0xff]
  %3 = vst [vmem:[%s1] sm:$0xff] %v2
  %s4 = scalar_lea.vmem %s1, 8
  %s5 = scalar_lea.vmem %s0, 8
  %v6 = vld [vmem:[%s5] sm:$0xff]
  %7 = vst [vmem:[%s4] sm:$0xff] %v6
  %s8 = scalar_lea.vmem %s1, 16
  %s9 = scalar_lea.vmem %s0, 16
  %v10 = vld [vmem:[%s9] sm:$0xff]
  %11 = vst [vmem:[%s8] sm:$0xff] %v10
  %s12 = scalar_lea.vmem %s1, 24
  %s13 = scalar_lea.vmem %s0, 24
  %v14 = vld [vmem:[%s13] sm:$0xff]
  %15 = vst [vmem:[%s12] sm:$0xff] %v14
  %s16 = scalar_lea.vmem %s1, 32
  %s17 = scalar_lea.vmem %s0, 32
  %v18 = vld [vmem:[%s17] sm:$0xff]
  %19 = vst [vmem:[%s16] sm:$0xff] %v18
  %s20 = scalar_lea.vmem %s1, 40
  %s21 = scalar_lea.vmem %s0, 40
  %v22 = vld [vmem:[%s21] sm:$0xff]
  %23 = vst [vmem:[%s20] sm:$0xff] %v22
  %s24 = scalar_lea.vmem %s1, 48
  %s25 = scalar_lea.vmem %s0, 48
  %v26 = vld [vmem:[%s25] sm:$0xff]
  %27 = vst [vmem:[%s24] sm:$0xff] %v26
  %s28 = scalar_lea.vmem %s1, 56
  %s29 = scalar_lea.vmem %s0, 56
  %v30 = vld [vmem:[%s29] sm:$0xff]
  %31 = vst [vmem:[%s28] sm:$0xff] %v30
  %s32 = scalar_lea.vmem %s1, 64
  %s33 = scalar_lea.vmem %s0, 64
  %v34 = vld [vmem:[%s33] sm:$0xff]
  %35 = vst [vmem:[%s32] sm:$0xff] %v34
  %s36 = scalar_lea.vmem %s1, 72
  %s37 = scalar_lea.vmem %s0, 72
  %v38 = vld [vmem:[%s37] sm:$0xff]
  %39 = vst [vmem:[%s36] sm:$0xff] %v38
  %s40 = scalar_lea.vmem %s1, 80
  %s41 = scalar_lea.vmem %s0, 80
  %v42 = vld [vmem:[%s41] sm:$0xff]
  %43 = vst [vmem:[%s40] sm:$0xff] %v42
  %s44 = scalar_lea.vmem %s1, 88
  %s45 = scalar_lea.vmem %s0, 88
  %v46 = vld [vmem:[%s45] sm:$0xff]
  %47 = vst [vmem:[%s44] sm:$0xff] %v46
  %s48 = scalar_lea.vmem %s1, 96
  %s49 = scalar_lea.vmem %s0, 96
  %v50 = vld [vmem:[%s49] sm:$0xff]
  %51 = vst [vmem:[%s48] sm:$0xff] %v50
  %s52 = scalar_lea.vmem %s1, 104
  %s53 = scalar_lea.vmem %s0, 104
  %v54 = vld [vmem:[%s53] sm:$0xff]
  %55 = vst [vmem:[%s52] sm:$0xff] %v54
  %s56 = scalar_lea.vmem %s1, 112
  %s57 = scalar_lea.vmem %s0, 112
  %v58 = vld [vmem:[%s57] sm:$0xff]
  %59 = vst [vmem:[%s56] sm:$0xff] %v58
  %s60 = scalar_lea.vmem %s1, 120
  %s61 = scalar_lea.vmem %s0, 120
  %v62 = vld [vmem:[%s61] sm:$0xff]
  %63 = vst [vmem:[%s60] sm:$0xff] %v62
  %s64 = scalar_lea.vmem %s1, 128
  %s65 = scalar_lea.vmem %s0, 128
  %v66 = vld [vmem:[%s65] sm:$0xff]
  %67 = vst [vmem:[%s64] sm:$0xff] %v66
  %s68 = scalar_lea.vmem %s1, 136
  %s69 = scalar_lea.vmem %s0, 136
  %v70 = vld [vmem:[%s69] sm:$0xff]
  %71 = vst [vmem:[%s68] sm:$0xff] %v70
  %s72 = scalar_lea.vmem %s1, 144
  %s73 = scalar_lea.vmem %s0, 144
  %v74 = vld [vmem:[%s73] sm:$0xff]
  %75 = vst [vmem:[%s72] sm:$0xff] %v74
  %s76 = scalar_lea.vmem %s1, 152
  %s77 = scalar_lea.vmem %s0, 152
  %v78 = vld [vmem:[%s77] sm:$0xff]
  %79 = vst [vmem:[%s76] sm:$0xff] %v78
  %s80 = scalar_lea.vmem %s1, 160
  %s81 = scalar_lea.vmem %s0, 160
  %v82 = vld [vmem:[%s81] sm:$0xff]
  %83 = vst [vmem:[%s80] sm:$0xff] %v82
  %s84 = scalar_lea.vmem %s1, 168
  %s85 = scalar_lea.vmem %s0, 168
  %v86 = vld [vmem:[%s85] sm:$0xff]
  %87 = vst [vmem:[%s84] sm:$0xff] %v86
  %s88 = scalar_lea.vmem %s1, 176
  %s89 = scalar_lea.vmem %s0, 176
  %v90 = vld [vmem:[%s89] sm:$0xff]
  %91 = vst [vmem:[%s88] sm:$0xff] %v90
  %s92 = scalar_lea.vmem %s1, 184
  %s93 = scalar_lea.vmem %s0, 184
  %v94 = vld [vmem:[%s93] sm:$0xff]
  %95 = vst [vmem:[%s92] sm:$0xff] %v94
  %s96 = scalar_lea.vmem %s1, 192
  %s97 = scalar_lea.vmem %s0, 192
  %v98 = vld [vmem:[%s97] sm:$0xff]
  %99 = vst [vmem:[%s96] sm:$0xff] %v98
  %s100 = scalar_lea.vmem %s1, 200
  %s101 = scalar_lea.vmem %s0, 200
  %v102 = vld [vmem:[%s101] sm:$0xff]
  %103 = vst [vmem:[%s100] sm:$0xff] %v102
  %s104 = scalar_lea.vmem %s1, 208
  %s105 = scalar_lea.vmem %s0, 208
  %v106 = vld [vmem:[%s105] sm:$0xff]
  %107 = vst [vmem:[%s104] sm:$0xff] %v106
  %s108 = scalar_lea.vmem %s1, 216
  %s109 = scalar_lea.vmem %s0, 216
  %v110 = vld [vmem:[%s109] sm:$0xff]
  %111 = vst [vmem:[%s108] sm:$0xff] %v110
  %s112 = scalar_lea.vmem %s1, 224
  %s113 = scalar_lea.vmem %s0, 224
  %v114 = vld [vmem:[%s113] sm:$0xff]
  %115 = vst [vmem:[%s112] sm:$0xff] %v114
  %s116 = scalar_lea.vmem %s1, 232
  %s117 = scalar_lea.vmem %s0, 232
  %v118 = vld [vmem:[%s117] sm:$0xff]
  %119 = vst [vmem:[%s116] sm:$0xff] %v118
  %s120 = scalar_lea.vmem %s1, 240
  %s121 = scalar_lea.vmem %s0, 240
  %v122 = vld [vmem:[%s121] sm:$0xff]
  %123 = vst [vmem:[%s120] sm:$0xff] %v122
  %s124 = scalar_lea.vmem %s1, 248
  %s125 = scalar_lea.vmem %s0, 248
  %v126 = vld [vmem:[%s125] sm:$0xff]
  %127 = vst [vmem:[%s124] sm:$0xff] %v126

// kernel: custom-call.1
$region0: #{custom-call.1}
  %s0 = inlined_call_operand.vmem [shape: c64[2,8,16,16], index: 0, kind: input, shape index: {}]
  %s1 = inlined_call_operand.vmem [shape: f32[2,8,16,16], index: 1, kind: output, shape index: {}]
  %s2 = scalar_lea.vmem %s0, 256
  %v3 = vld [vmem:[%s2] sm:$0xff]
  %4 = vst [vmem:[%s1] sm:$0xff] %v3
  %s5 = scalar_lea.vmem %s1, 8
  %s6 = scalar_lea.vmem %s2, 8
  %v7 = vld [vmem:[%s6] sm:$0xff]
  %8 = vst [vmem:[%s5] sm:$0xff] %v7
  %s9 = scalar_lea.vmem %s1, 16
  %s10 = scalar_lea.vmem %s2, 16
  %v11 = vld [vmem:[%s10] sm:$0xff]
  %12 = vst [vmem:[%s9] sm:$0xff] %v11
  %s13 = scalar_lea.vmem %s1, 24
  %s14 = scalar_lea.vmem %s2, 24
  %v15 = vld [vmem:[%s14] sm:$0xff]
  %16 = vst [vmem:[%s13] sm:$0xff] %v15
  %s17 = scalar_lea.vmem %s1, 32
  %s18 = scalar_lea.vmem %s2, 32
  %v19 = vld [vmem:[%s18] sm:$0xff]
  %20 = vst [vmem:[%s17] sm:$0xff] %v19
  %s21 = scalar_lea.vmem %s1, 40
  %s22 = scalar_lea.vmem %s2, 40
  %v23 = vld [vmem:[%s22] sm:$0xff]
  %24 = vst [vmem:[%s21] sm:$0xff] %v23
  %s25 = scalar_lea.vmem %s1, 48
  %s26 = scalar_lea.vmem %s2, 48
  %v27 = vld [vmem:[%s26] sm:$0xff]
  %28 = vst [vmem:[%s25] sm:$0xff] %v27
  %s29 = scalar_lea.vmem %s1, 56
  %s30 = scalar_lea.vmem %s2, 56
  %v31 = vld [vmem:[%s30] sm:$0xff]
  %32 = vst [vmem:[%s29] sm:$0xff] %v31
  %s33 = scalar_lea.vmem %s1, 64
  %s34 = scalar_lea.vmem %s2, 64
  %v35 = vld [vmem:[%s34] sm:$0xff]
  %36 = vst [vmem:[%s33] sm:$0xff] %v35
  %s37 = scalar_lea.vmem %s1, 72
  %s38 = scalar_lea.vmem %s2, 72
  %v39 = vld [vmem:[%s38] sm:$0xff]
  %40 = vst [vmem:[%s37] sm:$0xff] %v39
  %s41 = scalar_lea.vmem %s1, 80
  %s42 = scalar_lea.vmem %s2, 80
  %v43 = vld [vmem:[%s42] sm:$0xff]
  %44 = vst [vmem:[%s41] sm:$0xff] %v43
  %s45 = scalar_lea.vmem %s1, 88
  %s46 = scalar_lea.vmem %s2, 88
  %v47 = vld [vmem:[%s46] sm:$0xff]
  %48 = vst [vmem:[%s45] sm:$0xff] %v47
  %s49 = scalar_lea.vmem %s1, 96
  %s50 = scalar_lea.vmem %s2, 96
  %v51 = vld [vmem:[%s50] sm:$0xff]
  %52 = vst [vmem:[%s49] sm:$0xff] %v51
  %s53 = scalar_lea.vmem %s1, 104
  %s54 = scalar_lea.vmem %s2, 104
  %v55 = vld [vmem:[%s54] sm:$0xff]
  %56 = vst [vmem:[%s53] sm:$0xff] %v55
  %s57 = scalar_lea.vmem %s1, 112
  %s58 = scalar_lea.vmem %s2, 112
  %v59 = vld [vmem:[%s58] sm:$0xff]
  %60 = vst [vmem:[%s57] sm:$0xff] %v59
  %s61 = scalar_lea.vmem %s1, 120
  %s62 = scalar_lea.vmem %s2, 120
  %v63 = vld [vmem:[%s62] sm:$0xff]
  %64 = vst [vmem:[%s61] sm:$0xff] %v63
  %s65 = scalar_lea.vmem %s1, 128
  %s66 = scalar_lea.vmem %s2, 128
  %v67 = vld [vmem:[%s66] sm:$0xff]
  %68 = vst [vmem:[%s65] sm:$0xff] %v67
  %s69 = scalar_lea.vmem %s1, 136
  %s70 = scalar_lea.vmem %s2, 136
  %v71 = vld [vmem:[%s70] sm:$0xff]
  %72 = vst [vmem:[%s69] sm:$0xff] %v71
  %s73 = scalar_lea.vmem %s1, 144
  %s74 = scalar_lea.vmem %s2, 144
  %v75 = vld [vmem:[%s74] sm:$0xff]
  %76 = vst [vmem:[%s73] sm:$0xff] %v75
  %s77 = scalar_lea.vmem %s1, 152
  %s78 = scalar_lea.vmem %s2, 152
  %v79 = vld [vmem:[%s78] sm:$0xff]
  %80 = vst [vmem:[%s77] sm:$0xff] %v79
  %s81 = scalar_lea.vmem %s1, 160
  %s82 = scalar_lea.vmem %s2, 160
  %v83 = vld [vmem:[%s82] sm:$0xff]
  %84 = vst [vmem:[%s81] sm:$0xff] %v83
  %s85 = scalar_lea.vmem %s1, 168
  %s86 = scalar_lea.vmem %s2, 168
  %v87 = vld [vmem:[%s86] sm:$0xff]
  %88 = vst [vmem:[%s85] sm:$0xff] %v87
  %s89 = scalar_lea.vmem %s1, 176
  %s90 = scalar_lea.vmem %s2, 176
  %v91 = vld [vmem:[%s90] sm:$0xff]
  %92 = vst [vmem:[%s89] sm:$0xff] %v91
  %s93 = scalar_lea.vmem %s1, 184
  %s94 = scalar_lea.vmem %s2, 184
  %v95 = vld [vmem:[%s94] sm:$0xff]
  %96 = vst [vmem:[%s93] sm:$0xff] %v95
  %s97 = scalar_lea.vmem %s1, 192
  %s98 = scalar_lea.vmem %s2, 192
  %v99 = vld [vmem:[%s98] sm:$0xff]
  %100 = vst [vmem:[%s97] sm:$0xff] %v99
  %s101 = scalar_lea.vmem %s1, 200
  %s102 = scalar_lea.vmem %s2, 200
  %v103 = vld [vmem:[%s102] sm:$0xff]
  %104 = vst [vmem:[%s101] sm:$0xff] %v103
  %s105 = scalar_lea.vmem %s1, 208
  %s106 = scalar_lea.vmem %s2, 208
  %v107 = vld [vmem:[%s106] sm:$0xff]
  %108 = vst [vmem:[%s105] sm:$0xff] %v107
  %s109 = scalar_lea.vmem %s1, 216
  %s110 = scalar_lea.vmem %s2, 216
  %v111 = vld [vmem:[%s110] sm:$0xff]
  %112 = vst [vmem:[%s109] sm:$0xff] %v111
  %s113 = scalar_lea.vmem %s1, 224
  %s114 = scalar_lea.vmem %s2, 224
  %v115 = vld [vmem:[%s114] sm:$0xff]
  %116 = vst [vmem:[%s113] sm:$0xff] %v115
  %s117 = scalar_lea.vmem %s1, 232
  %s118 = scalar_lea.vmem %s2, 232
  %v119 = vld [vmem:[%s118] sm:$0xff]
  %120 = vst [vmem:[%s117] sm:$0xff] %v119
  %s121 = scalar_lea.vmem %s1, 240
  %s122 = scalar_lea.vmem %s2, 240
  %v123 = vld [vmem:[%s122] sm:$0xff]
  %124 = vst [vmem:[%s121] sm:$0xff] %v123
  %s125 = scalar_lea.vmem %s1, 248
  %s126 = scalar_lea.vmem %s2, 248
  %v127 = vld [vmem:[%s126] sm:$0xff]
  %128 = vst [vmem:[%s125] sm:$0xff] %v127

// kernel: custom-call.3
$region0: #{custom-call.3}
  %s0 = inlined_call_operand.hbm [shape: c64[8,4,3], index: 0, kind: input, shape index: {}]
  %s1 = inlined_call_operand.vmem [shape: f32[8,4,3], index: 1, kind: output, shape index: {}]
  %s2 = scalar_lea.hbm %s0, 192
  $region1: #{custom-call.3} parent=0
    #allocation0 [shape = 's32[1]{0}', space=sflag, size = 0x4, scoped, tag = 'scoped memory for custom-call.3']
    %3 = vsyncpa [#allocation0], 0
    %s4 = sshll.u32 %s1, 4
    %s5 = int_to_ptr.vmem [resolvable:$true] %s4
    %7 = dma.hbm_to_vmem [thread:$0]  %s2, 192, %s5, [#allocation0]
    %8 = dma.done [#allocation0], 192
    %9 = vsyncpa [#allocation0], 1

// kernel: neg.1
$region0: #{neg.1}
  #allocation0 [shape = 's32[1]{0}', space=sflag, size = 0x4, scoped, tag = 'scoped memory for neg.1']
  %s0 = inlined_call_operand.vmem [shape: f32[8,24], index: 0, kind: input, shape index: {}]
  %s1 = inlined_call_operand.vmem [shape: f32[8,24], index: 1, kind: output, shape index: {}]
  %v2 = vld [vmem:[%s0] sm:$0xff]
  %3 = xla_tuple %v2
  %4 = xla_tuple %3
  %v5 = vxor.u32 %v2, 2147483648
  %6 = xla_tuple %v5
  %7 = vst [vmem:[%s1] sm:$0xff] %v5

// kernel: custom-call.2
$region0: #{custom-call.2}
  %s0 = inlined_call_operand.hbm [shape: c64[8,4,3], index: 0, kind: input, shape index: {}]
  %s1 = inlined_call_operand.vmem [shape: f32[8,4,3], index: 1, kind: output, shape index: {}]
  $region1: #{custom-call.2} parent=0
    #allocation0 [shape = 's32[1]{0}', space=sflag, size = 0x4, scoped, tag = 'scoped memory for custom-call.2']
    %2 = vsyncpa [#allocation0], 0
    %s3 = sshll.u32 %s1, 4
    %s4 = int_to_ptr.vmem [resolvable:$true] %s3
    %6 = dma.hbm_to_vmem [thread:$0]  %s0, 192, %s4, [#allocation0]
    %7 = dma.done [#allocation0], 192
    %8 = vsyncpa [#allocation0], 1

// kernel: custom-call.4
$region0: #{custom-call.4}
  %s0 = inlined_call_operand.vmem [shape: f32[2,8,16,16], index: 0, kind: input, shape index: {}]
  %s1 = inlined_call_operand.vmem [shape: f32[2,8,16,16], index: 1, kind: input, shape index: {}]
  %s2 = inlined_call_operand.hbm [shape: c64[2,8,16,16], index: 2, kind: output, shape index: {}]
  %s3 = scalar_lea.hbm %s2, 4096
  $region1: #{custom-call.4} parent=0
    #allocation0 [shape = 's32[1]{0}', space=sflag, size = 0x4, scoped, tag = 'scoped memory for custom-call.4']
    %4 = vsyncpa [#allocation0], 0
    %s5 = sshll.u32 %s0, 4
    %s6 = int_to_ptr.vmem [resolvable:$true] %s5
    %8 = dma.vmem_to_hbm [thread:$0]  %s6, 4096, %s2, [#allocation0]
    %9 = dma.done [#allocation0], 4096
    %10 = vsyncpa [#allocation0], 1
  $region2: #{custom-call.4} parent=0
    #allocation1 [shape = 's32[1]{0}', space=sflag, size = 0x4, scoped, tag = 'scoped memory for custom-call.4']
    %11 = vsyncpa [#allocation1], 0
    %s12 = sshll.u32 %s1, 4
    %s13 = int_to_ptr.vmem [resolvable:$true] %s12
    %15 = dma.vmem_to_hbm [thread:$0]  %s13, 4096, %s3, [#allocation1]
    %16 = dma.done [#allocation1], 4096
    %17 = vsyncpa [#allocation1], 1

// kernel: slow_complex_conv1d.1
$region0: #{slow_complex_conv1d.1}
  #allocation0 [shape = 'u32[]', space=smem, size = 0x4, offset = 0x4, fixed_abs, tag = 'smem constant byte address 0x4 - core index']
  #allocation1 [shape = 'u32[144,128]{1,0:T(1,128)}', space=vmem, size = 0x12000, scoped, tag = 'internal scratch']
  #allocation2 [shape = 'f32[8,384]{1,0:T(8,128)}', space=vmem, size = 0x3000, scoped, tag = 'scratch operand']
  #allocation3 [shape = 'f32[8,384]{1,0:T(8,128)}', space=vmem, size = 0x3000, scoped, tag = 'scratch operand']
  %s0 = inlined_call_operand.vmem [shape: f32[2,8,384], index: 0, kind: input, shape index: {}, may-alias: {0,2}]
  %s1 = inlined_call_operand.vmem [shape: f32[2,8,384], index: 1, kind: input, shape index: {}, may-alias: {1,3}]
  %s2 = inlined_call_operand.vmem [shape: f32[2,8,384], index: 2, kind: input, shape index: {}, may-alias: {0,2}]
  %s3 = inlined_call_operand.vmem [shape: f32[2,8,384], index: 3, kind: input, shape index: {}, may-alias: {1,3}]
  %s4 = inlined_call_operand.vmem [shape: f32[16,48], index: 4, kind: input, shape index: {}]
  %s5 = inlined_call_operand.vmem [shape: f32[2,16,256], index: 5, kind: output, shape index: {}]
  %s6 = sld [smem:[#allocation0]]
  $region53: #{slow_complex_conv1d.1} parent=0
    _
  %s8 = ssub.s32 1, %s6
  %s9 = scalar_select 0, %s8, %s6
  loop: start=0, step=1, limit=4
  $region2: #{slow_complex_conv1d.1} parent=0 // loop_pre_header
    _
  $region3: #{slow_complex_conv1d.1} parent=0 // loop_header
    %s11 = sphi 0, %s15
    %p12 = scmp.ge.s32.totalorder %s11, 4
    %s18 = sphi 0, %s30
    %s19 = sphi 0, %s26
    %s20 = sphi 0, %s18
    %s21 = sphi 0, %s19
    %s22 = sphi 0, %s20
    %s23 = sphi 0, %s21
    %s35 = sphi 0, %s37
    %s38 = sphi 0, %s35
    %s39 = sphi 0, %s38
    %s55 = sphi 0, %s39
    %s63 = sphi 0, %s65
    %s66 = sphi 0, %s63
    %s67 = sphi 0, %s66
    %s83 = sphi 0, %s67
    %s95 = sphi 0, %s97
    %s98 = sphi 0, %s95
    %s99 = sphi 0, %s98
    %s115 = sphi 0, %s99
    %s127 = sphi 0, %s129
    %s130 = sphi 0, %s127
    %s131 = sphi 0, %s130
    %s147 = sphi 0, %s131
    %s151 = sphi 0, %s151
    %s153 = sphi 0, %s151
    %s154 = sphi 0, %s153
    %s168 = sphi 0, %s154
    %s176 = sphi 0, %s178
    %s179 = sphi 0, %s176
    %s180 = sphi 0, %s179
    %s196 = sphi 0, %s180
  $region4: #{slow_complex_conv1d.1} parent=0 // loop_header_branch
    %14 = sbr.rel (%p12) target = $region8
  $region5: #{slow_complex_conv1d.1} parent=0 // loop_body
    %s16 = ssub.s32 %s11, 1
    %s17 = ssub.s32 %s11, 2
    %s24 = sadd.s32 1, %s19
    %p25 = scmp.ge.s32.totalorder %s24, 1
    %s26 = scalar_select %p25, 0, %s24
    %s27 = sadd.s32 1, %s18
    %s28 = scalar_select %p25, %s27, %s18
    %p29 = scmp.ge.s32.totalorder %s28, 2
    %s30 = scalar_select %p29, 0, %s28
    %s31 = ssub.s32 %s18, %s30
    %s32 = ssub.s32 %s19, %s26
    %s33 = sor.u32 %s31, %s32
    %p34 = scmp.eq.s32.totalorder %s33, 0
    %s36 = sadd.s32 %s35, 1
    %s37 = scalar_select %p34, %s35, %s36
    %p40 = pneg %p34
    %p41 = scmp.eq.s32.totalorder %s11, 1
    %p42 = por %p40, %p41
    %p43 = scmp.ne.s32.totalorder %s35, %s38
    %p44 = scmp.eq.s32.totalorder %s11, 0
    %p45 = por %p43, %p44
    %p46 = scmp.ne.s32.totalorder %s35, %s38
    %p47 = scmp.eq.s32.totalorder %s16, 1
    %p48 = por %p46, %p47
    %p49 = scmp.ne.s32.totalorder %s38, %s39
    %p50 = scmp.eq.s32.totalorder %s16, 0
    %p51 = por %p49, %p50
    %p52 = scmp.ne.s32.totalorder %s38, %s39
    %p53 = scmp.eq.s32.totalorder %s17, 1
    %p54 = por %p52, %p53
    %p56 = scmp.ne.s32.totalorder %s39, %s55
    %p57 = scmp.eq.s32.totalorder %s17, 0
    %p58 = por %p56, %p57
    %s59 = ssub.s32 %s18, %s30
    %s60 = ssub.s32 %s19, %s26
    %s61 = sor.u32 %s59, %s60
    %p62 = scmp.eq.s32.totalorder %s61, 0
    %s64 = sadd.s32 %s63, 1
    %s65 = scalar_select %p62, %s63, %s64
    %p68 = pneg %p62
    %p69 = scmp.eq.s32.totalorder %s11, 1
    %p70 = por %p68, %p69
    %p71 = scmp.ne.s32.totalorder %s63, %s66
    %p72 = scmp.eq.s32.totalorder %s11, 0
    %p73 = por %p71, %p72
    %p74 = scmp.ne.s32.totalorder %s63, %s66
    %p75 = scmp.eq.s32.totalorder %s16, 1
    %p76 = por %p74, %p75
    %p77 = scmp.ne.s32.totalorder %s66, %s67
    %p78 = scmp.eq.s32.totalorder %s16, 0
    %p79 = por %p77, %p78
    %p80 = scmp.ne.s32.totalorder %s66, %s67
    %p81 = scmp.eq.s32.totalorder %s17, 1
    %p82 = por %p80, %p81
    %p84 = scmp.ne.s32.totalorder %s67, %s83
    %p85 = scmp.eq.s32.totalorder %s17, 0
    %p86 = por %p84, %p85
    %s87 = sadd.s32 %s19, 1
    %s88 = smul.u32 %s87, 2
    %s89 = sadd.s32 %s26, 1
    %s90 = smul.u32 %s89, 2
    %s91 = ssub.s32 %s18, %s30
    %s92 = ssub.s32 %s88, %s90
    %s93 = sor.u32 %s91, %s92
    %p94 = scmp.eq.s32.totalorder %s93, 0
    %s96 = sadd.s32 %s95, 1
    %s97 = scalar_select %p94, %s95, %s96
    %p100 = pneg %p94
    %p101 = scmp.eq.s32.totalorder %s11, 1
    %p102 = por %p100, %p101
    %p103 = scmp.ne.s32.totalorder %s95, %s98
    %p104 = scmp.eq.s32.totalorder %s11, 0
    %p105 = por %p103, %p104
    %p106 = scmp.ne.s32.totalorder %s95, %s98
    %p107 = scmp.eq.s32.totalorder %s16, 1
    %p108 = por %p106, %p107
    %p109 = scmp.ne.s32.totalorder %s98, %s99
    %p110 = scmp.eq.s32.totalorder %s16, 0
    %p111 = por %p109, %p110
    %p112 = scmp.ne.s32.totalorder %s98, %s99
    %p113 = scmp.eq.s32.totalorder %s17, 1
    %p114 = por %p112, %p113
    %p116 = scmp.ne.s32.totalorder %s99, %s115
    %p117 = scmp.eq.s32.totalorder %s17, 0
    %p118 = por %p116, %p117
    %s119 = sadd.s32 %s19, 1
    %s120 = smul.u32 %s119, 2
    %s121 = sadd.s32 %s26, 1
    %s122 = smul.u32 %s121, 2
    %s123 = ssub.s32 %s18, %s30
    %s124 = ssub.s32 %s120, %s122
    %s125 = sor.u32 %s123, %s124
    %p126 = scmp.eq.s32.totalorder %s125, 0
    %s128 = sadd.s32 %s127, 1
    %s129 = scalar_select %p126, %s127, %s128
    %p132 = pneg %p126
    %p133 = scmp.eq.s32.totalorder %s11, 1
    %p134 = por %p132, %p133
    %p135 = scmp.ne.s32.totalorder %s127, %s130
    %p136 = scmp.eq.s32.totalorder %s11, 0
    %p137 = por %p135, %p136
    %p138 = scmp.ne.s32.totalorder %s127, %s130
    %p139 = scmp.eq.s32.totalorder %s16, 1
    %p140 = por %p138, %p139
    %p141 = scmp.ne.s32.totalorder %s130, %s131
    %p142 = scmp.eq.s32.totalorder %s16, 0
    %p143 = por %p141, %p142
    %p144 = scmp.ne.s32.totalorder %s130, %s131
    %p145 = scmp.eq.s32.totalorder %s17, 1
    %p146 = por %p144, %p145
    %p148 = scmp.ne.s32.totalorder %s131, %s147
    %p149 = scmp.eq.s32.totalorder %s17, 0
    %p150 = por %p148, %p149
    %s152 = sadd.s32 %s151, 1
    %p155 = scmp.eq.s32.totalorder %s11, 1
    %p156 = scmp.ne.s32.totalorder %s151, %s153
    %p157 = scmp.eq.s32.totalorder %s11, 0
    %p158 = por %p156, %p157
    %p159 = scmp.ne.s32.totalorder %s151, %s153
    %p160 = scmp.eq.s32.totalorder %s16, 1
    %p161 = por %p159, %p160
    %p162 = scmp.ne.s32.totalorder %s153, %s154
    %p163 = scmp.eq.s32.totalorder %s16, 0
    %p164 = por %p162, %p163
    %p165 = scmp.ne.s32.totalorder %s153, %s154
    %p166 = scmp.eq.s32.totalorder %s17, 1
    %p167 = por %p165, %p166
    %p169 = scmp.ne.s32.totalorder %s154, %s168
    %p170 = scmp.eq.s32.totalorder %s17, 0
    %p171 = por %p169, %p170
    %s172 = ssub.s32 %s18, %s30
    %s173 = ssub.s32 %s19, %s26
    %s174 = sor.u32 %s172, %s173
    %p175 = scmp.eq.s32.totalorder %s174, 0
    %s177 = sadd.s32 %s176, 1
    %s178 = scalar_select %p175, %s176, %s177
    %p181 = pneg %p175
    %p182 = scmp.eq.s32.totalorder %s11, 1
    %p183 = por %p181, %p182
    %p184 = scmp.ne.s32.totalorder %s176, %s179
    %p185 = scmp.eq.s32.totalorder %s11, 0
    %p186 = por %p184, %p185
    %p187 = scmp.ne.s32.totalorder %s176, %s179
    %p188 = scmp.eq.s32.totalorder %s16, 1
    %p189 = por %p187, %p188
    %p190 = scmp.ne.s32.totalorder %s179, %s180
    %p191 = scmp.eq.s32.totalorder %s16, 0
    %p192 = por %p190, %p191
    %p193 = scmp.ne.s32.totalorder %s179, %s180
    %p194 = scmp.eq.s32.totalorder %s17, 1
    %p195 = por %p193, %p194
    %p197 = scmp.ne.s32.totalorder %s180, %s196
    %p198 = scmp.eq.s32.totalorder %s17, 0
    %p199 = por %p197, %p198
    %p200 = scmp.le.s32.totalorder 1, %s11
    %p201 = scmp.lt.s32.totalorder %s11, 3
    %p202 = pnand %p200, %p201
    %p203 = pneg %p202
    // Predicated region
    $region9: #{slow_complex_conv1d.1} parent=5 // pred_check
      _
    $region10: #{slow_complex_conv1d.1} parent=5 // pred_check_branch
      %205 = sbr.rel (%p202) target = $region12
    $region11: #{slow_complex_conv1d.1} parent=5 // pred_region
      %s206 = ssub.s32 %s11, 1
      // Predicated region
      $region13: #{slow_complex_conv1d.1} parent=11 // pred_check
        %p207 = pneg %p164
      $region14: #{slow_complex_conv1d.1} parent=11 // pred_check_branch
        %209 = sbr.rel (%p207) target = $region16
      $region15: #{slow_complex_conv1d.1} parent=11 // pred_region
        _
      $region16: #{slow_complex_conv1d.1} parent=11 // pred_fallthru
        _
    $region12: #{slow_complex_conv1d.1} parent=5 // pred_fallthru
      _
    %p210 = scmp.lt.s32.totalorder %s11, 2
    // Predicated region
    $region17: #{slow_complex_conv1d.1} parent=5 // pred_check
      %p211 = pneg %p210
    $region18: #{slow_complex_conv1d.1} parent=5 // pred_check_branch
      %213 = sbr.rel (%p211) target = $region20
    $region19: #{slow_complex_conv1d.1} parent=5 // pred_region
      // Predicated region
      $region21: #{slow_complex_conv1d.1} parent=19 // pred_check
        %p214 = pneg %p45
      $region22: #{slow_complex_conv1d.1} parent=19 // pred_check_branch
        %216 = sbr.rel (%p214) target = $region24
      $region23: #{slow_complex_conv1d.1} parent=19 // pred_region
        %s217 = smul.u32 2, %s19
        %s218 = ssub.s32 3, %s217
        %p219 = scmp.lt.s32.totalorder %s218, 2
        %s220 = scalar_select %p219, %s218, 2
        %s221 = smul.u32 128, %s220
        %p222 = scmp.lt.s32.totalorder %s18, 1
        %s223 = scalar_select %p222, %s18, 1
        %p224 = scmp.lt.s32.totalorder %s217, 2
        %s225 = scalar_select %p224, %s217, 2
        %s226 = smul.addr %s223, 3
        %s227 = sadd.s32 %s225, %s226
        %s228 = smul.addr %s227, 8
        %s229 = scalar_lea.vmem %s0, %s228
        %s230 = smul.u32 2, %s19
        %s231 = ssub.s32 3, %s230
        %p232 = scmp.lt.s32.totalorder %s231, 2
        %s233 = scalar_select %p232, %s231, 2
        %s234 = smul.u32 128, %s233
      $region24: #{slow_complex_conv1d.1} parent=19 // pred_fallthru
        _
      // Predicated region
      $region25: #{slow_complex_conv1d.1} parent=19 // pred_check
        %p235 = pneg %p73
      $region26: #{slow_complex_conv1d.1} parent=19 // pred_check_branch
        %237 = sbr.rel (%p235) target = $region28
      $region27: #{slow_complex_conv1d.1} parent=19 // pred_region
        %s238 = smul.u32 2, %s19
        %s239 = ssub.s32 3, %s238
        %p240 = scmp.lt.s32.totalorder %s239, 2
        %s241 = scalar_select %p240, %s239, 2
        %s242 = smul.u32 128, %s241
        %p243 = scmp.lt.s32.totalorder %s18, 1
        %s244 = scalar_select %p243, %s18, 1
        %p245 = scmp.lt.s32.totalorder %s238, 2
        %s246 = scalar_select %p245, %s238, 2
        %s247 = smul.addr %s244, 3
        %s248 = sadd.s32 %s246, %s247
        %s249 = smul.addr %s248, 8
        %s250 = scalar_lea.vmem %s1, %s249
        %s251 = smul.u32 2, %s19
        %s252 = ssub.s32 3, %s251
        %p253 = scmp.lt.s32.totalorder %s252, 2
        %s254 = scalar_select %p253, %s252, 2
        %s255 = smul.u32 128, %s254
      $region28: #{slow_complex_conv1d.1} parent=19 // pred_fallthru
        _
      // Predicated region
      $region29: #{slow_complex_conv1d.1} parent=19 // pred_check
        %p256 = pneg %p105
      $region30: #{slow_complex_conv1d.1} parent=19 // pred_check_branch
        %258 = sbr.rel (%p256) target = $region32
      $region31: #{slow_complex_conv1d.1} parent=19 // pred_region
        %s259 = sadd.s32 %s19, 1
        %s260 = smul.u32 %s259, 2
        %p261 = scmp.lt.s32.totalorder %s18, 1
        %s262 = scalar_select %p261, %s18, 1
        %p263 = scmp.lt.s32.totalorder %s260, 2
        %s264 = scalar_select %p263, %s260, 2
        %s265 = smul.addr %s262, 3
        %s266 = sadd.s32 %s264, %s265
        %s267 = smul.addr %s266, 8
        %s268 = scalar_lea.vmem %s2, %s267
        %s269 = sadd.s32 %s19, 1
        %s270 = smul.u32 %s269, 2
      $region32: #{slow_complex_conv1d.1} parent=19 // pred_fallthru
        _
      // Predicated region
      $region33: #{slow_complex_conv1d.1} parent=19 // pred_check
        %p271 = pneg %p137
      $region34: #{slow_complex_conv1d.1} parent=19 // pred_check_branch
        %273 = sbr.rel (%p271) target = $region36
      $region35: #{slow_complex_conv1d.1} parent=19 // pred_region
        %s274 = sadd.s32 %s19, 1
        %s275 = smul.u32 %s274, 2
        %p276 = scmp.lt.s32.totalorder %s18, 1
        %s277 = scalar_select %p276, %s18, 1
        %p278 = scmp.lt.s32.totalorder %s275, 2
        %s279 = scalar_select %p278, %s275, 2
        %s280 = smul.addr %s277, 3
        %s281 = sadd.s32 %s279, %s280
        %s282 = smul.addr %s281, 8
        %s283 = scalar_lea.vmem %s3, %s282
        %s284 = sadd.s32 %s19, 1
        %s285 = smul.u32 %s284, 2
      $region36: #{slow_complex_conv1d.1} parent=19 // pred_fallthru
        _
    $region20: #{slow_complex_conv1d.1} parent=5 // pred_fallthru
      _
    %p286 = scmp.le.s32.totalorder 1, %s11
    %p287 = scmp.lt.s32.totalorder %s11, 3
    %p288 = pnand %p286, %p287
    %p289 = pneg %p288
    // Predicated region
    $region37: #{slow_complex_conv1d.1} parent=5 // pred_check
      _
    $region38: #{slow_complex_conv1d.1} parent=5 // pred_check_branch
      %291 = sbr.rel (%p288) target = $region40
    $region39: #{slow_complex_conv1d.1} parent=5 // pred_region
      %s292 = ssub.s32 %s11, 1
      %s293 = smul.u32 2, %s21
      %s294 = ssub.s32 3, %s293
      %p295 = scmp.lt.s32.totalorder %s294, 2
      %s296 = scalar_select %p295, %s294, 2
      %s297 = smul.u32 128, %s296
      %p298 = scmp.lt.s32.totalorder %s20, 1
      %s299 = scalar_select %p298, %s20, 1
      %p300 = scmp.lt.s32.totalorder %s293, 2
      %s301 = scalar_select %p300, %s293, 2
      %s302 = smul.addr %s299, 3
      %s303 = sadd.s32 %s301, %s302
      %s304 = smul.addr %s303, 8
      %s305 = scalar_lea.vmem %s0, %s304
      %p306 = pneg %p51
      %p307 = pneg %p48
      %s308 = smul.u32 2, %s21
      %s309 = ssub.s32 3, %s308
      %p310 = scmp.lt.s32.totalorder %s309, 2
      %s311 = scalar_select %p310, %s309, 2
      %s312 = smul.u32 128, %s311
      %p313 = scmp.lt.s32.totalorder %s20, 1
      %s314 = scalar_select %p313, %s20, 1
      %p315 = scmp.lt.s32.totalorder %s308, 2
      %s316 = scalar_select %p315, %s308, 2
      %s317 = smul.addr %s314, 3
      %s318 = sadd.s32 %s316, %s317
      %s319 = smul.addr %s318, 8
      %s320 = scalar_lea.vmem %s1, %s319
      %p321 = pneg %p79
      %p322 = pneg %p76
      %s323 = sadd.s32 %s21, 1
      %s324 = smul.u32 %s323, 2
      %p325 = scmp.lt.s32.totalorder %s20, 1
      %s326 = scalar_select %p325, %s20, 1
      %p327 = scmp.lt.s32.totalorder %s324, 2
      %s328 = scalar_select %p327, %s324, 2
      %s329 = smul.addr %s326, 3
      %s330 = sadd.s32 %s328, %s329
      %s331 = smul.addr %s330, 8
      %s332 = scalar_lea.vmem %s2, %s331
      %p333 = pneg %p111
      %p334 = pneg %p108
      %s335 = sadd.s32 %s21, 1
      %s336 = smul.u32 %s335, 2
      %p337 = scmp.lt.s32.totalorder %s20, 1
      %s338 = scalar_select %p337, %s20, 1
      %p339 = scmp.lt.s32.totalorder %s336, 2
      %s340 = scalar_select %p339, %s336, 2
      %s341 = smul.addr %s338, 3
      %s342 = sadd.s32 %s340, %s341
      %s343 = smul.addr %s342, 8
      %s344 = scalar_lea.vmem %s3, %s343
      %p345 = pneg %p143
      %p346 = pneg %p140
      %p347 = pneg %p164
      %p348 = pneg %p161
      %p349 = pneg %p192
      %p350 = pneg %p189
      %s351 = smul.u32 2, %s21
      %p352 = scmp.lt.s32.totalorder %s20, 1
      %s353 = scalar_select %p352, %s20, 1
      %p354 = scmp.lt.s32.totalorder %s351, 1
      %s355 = scalar_select %p354, %s351, 1
      %s356 = smul.addr %s353, 4
      %s357 = sadd.s32 %s355, %s356
      %s358 = smul.addr %s357, 8
      %s359 = scalar_lea.vmem %s5, %s358
      %s360 = smul.u32 2, %s21
      %s361 = ssub.s32 3, %s360
      %p362 = scmp.lt.s32.totalorder %s361, 2
      %s363 = scalar_select %p362, %s361, 2
      %s364 = smul.u32 128, %s363
      %p365 = scmp.lt.s32.totalorder %s20, 1
      %s366 = scalar_select %p365, %s20, 1
      %p367 = scmp.lt.s32.totalorder %s360, 2
      %s368 = scalar_select %p367, %s360, 2
      %s369 = smul.addr %s366, 3
      %s370 = sadd.s32 %s368, %s369
      %s371 = smul.addr %s370, 8
      %s372 = scalar_lea.vmem %s0, %s371
      %s373 = smul.u32 2, %s21
      %s374 = ssub.s32 3, %s373
      %p375 = scmp.lt.s32.totalorder %s374, 2
      %s376 = scalar_select %p375, %s374, 2
      %s377 = smul.u32 128, %s376
      %s378 = smul.u32 2, %s21
      %s379 = ssub.s32 3, %s378
      %p380 = scmp.lt.s32.totalorder %s379, 2
      %s381 = scalar_select %p380, %s379, 2
      %s382 = smul.u32 128, %s381
      %p383 = scmp.lt.s32.totalorder %s20, 1
      %s384 = scalar_select %p383, %s20, 1
      %p385 = scmp.lt.s32.totalorder %s378, 2
      %s386 = scalar_select %p385, %s378, 2
      %s387 = smul.addr %s384, 3
      %s388 = sadd.s32 %s386, %s387
      %s389 = smul.addr %s388, 8
      %s390 = scalar_lea.vmem %s1, %s389
      %s391 = smul.u32 2, %s21
      %s392 = ssub.s32 3, %s391
      %p393 = scmp.lt.s32.totalorder %s392, 2
      %s394 = scalar_select %p393, %s392, 2
      %s395 = smul.u32 128, %s394
      %s396 = sadd.s32 %s21, 1
      %s397 = smul.u32 %s396, 2
      %p398 = scmp.lt.s32.totalorder %s20, 1
      %s399 = scalar_select %p398, %s20, 1
      %p400 = scmp.lt.s32.totalorder %s397, 2
      %s401 = scalar_select %p400, %s397, 2
      %s402 = smul.addr %s399, 3
      %s403 = sadd.s32 %s401, %s402
      %s404 = smul.addr %s403, 8
      %s405 = scalar_lea.vmem %s2, %s404
      %s406 = sadd.s32 %s21, 1
      %s407 = smul.u32 %s406, 2
      %s408 = sadd.s32 %s21, 1
      %s409 = smul.u32 %s408, 2
      %p410 = scmp.lt.s32.totalorder %s20, 1
      %s411 = scalar_select %p410, %s20, 1
      %p412 = scmp.lt.s32.totalorder %s409, 2
      %s413 = scalar_select %p412, %s409, 2
      %s414 = smul.addr %s411, 3
      %s415 = sadd.s32 %s413, %s414
      %s416 = smul.addr %s415, 8
      %s417 = scalar_lea.vmem %s3, %s416
      %s418 = sadd.s32 %s21, 1
      %s419 = smul.u32 %s418, 2
      %s420 = smul.u32 2, %s21
      %p421 = scmp.lt.s32.totalorder %s20, 1
      %s422 = scalar_select %p421, %s20, 1
      %p423 = scmp.lt.s32.totalorder %s420, 1
      %s424 = scalar_select %p423, %s420, 1
      %s425 = smul.addr %s422, 4
      %s426 = sadd.s32 %s424, %s425
      %s427 = smul.addr %s426, 8
      %s428 = scalar_lea.vmem %s5, %s427
      %s429 = smul.u32 2, %s21
      %v430 = vld [vmem:[%s372] sm:$0xff]
      %v431 = vld [vmem:[%s372 + $0x8] sm:$0xff]
      %432 = vst [vmem:[#allocation2] sm:$0xff] %v430
      %433 = vst [vmem:[#allocation2 + $0x8] sm:$0xff] %v431
      %v434 = vld [vmem:[%s405] sm:$0xff]
      %435 = vst [vmem:[#allocation2 + $0x10] sm:$0xff] %v434
      %v436 = vld [vmem:[%s390] sm:$0xff]
      %v437 = vld [vmem:[%s390 + $0x8] sm:$0xff]
      %438 = vst [vmem:[#allocation3] sm:$0xff] %v436
      %439 = vst [vmem:[#allocation3 + $0x8] sm:$0xff] %v437
      %v440 = vld [vmem:[%s417] sm:$0xff]
      %441 = vst [vmem:[#allocation3 + $0x10] sm:$0xff] %v440
      %v442 = vld [vmem:[#allocation2] sm:$0xff]
      %v443 = vld [vmem:[#allocation2 + $0x8] sm:$0xff]
      %v444 = vld [vmem:[#allocation2] sm:$0xff]
      %v445 = vld [vmem:[#allocation2 + $0x8] sm:$0xff]
      %v446 = vld [vmem:[#allocation2 + $0x10] sm:$0xff]
      %v447 = vld [vmem:[#allocation3] sm:$0xff]
      %v448 = vld [vmem:[#allocation3 + $0x8] sm:$0xff]
      %v449 = vld [vmem:[#allocation3] sm:$0xff]
      %v450 = vld [vmem:[#allocation3 + $0x8] sm:$0xff]
      %v451 = vld [vmem:[#allocation3 + $0x10] sm:$0xff]
      %455 = vrot.lane.b32.xlu0 %v444, 112
      %v456 = vpop.permute.xlu0 %455
      %457 = vrot.lane.b32.xlu0 %v445, 112
      %v458 = vpop.permute.xlu0 %457
      %459 = vrot.lane.b32.xlu0 %v446, 112
      %v460 = vpop.permute.xlu0 %459
      %vm461 = vcmask 916480
      %v462 = vsel %vm461, %v456, %v458
      %v463 = vsel %vm461, %v458, %v460
      %466 = vrot.lane.b32.xlu0 %v444, 96
      %v467 = vpop.permute.xlu0 %466
      %468 = vrot.lane.b32.xlu0 %v445, 96
      %v469 = vpop.permute.xlu0 %468
      %470 = vrot.lane.b32.xlu0 %v446, 96
      %v471 = vpop.permute.xlu0 %470
      %vm472 = vcmask 785408
      %v473 = vsel %vm472, %v467, %v469
      %v474 = vsel %vm472, %v469, %v471
      %480 = vrot.lane.b32.xlu0 %v449, 112
      %v481 = vpop.permute.xlu0 %480
      %482 = vrot.lane.b32.xlu0 %v450, 112
      %v483 = vpop.permute.xlu0 %482
      %484 = vrot.lane.b32.xlu0 %v451, 112
      %v485 = vpop.permute.xlu0 %484
      %v486 = vsel %vm461, %v481, %v483
      %v487 = vsel %vm461, %v483, %v485
      %490 = vrot.lane.b32.xlu0 %v449, 96
      %v491 = vpop.permute.xlu0 %490
      %492 = vrot.lane.b32.xlu0 %v450, 96
      %v493 = vpop.permute.xlu0 %492
      %494 = vrot.lane.b32.xlu0 %v451, 96
      %v495 = vpop.permute.xlu0 %494
      %v496 = vsel %vm472, %v491, %v493
      %v497 = vsel %vm472, %v493, %v495
      %v500 = vld [vmem:[%s4] sm:$0xff]
      %v501 = vld [vmem:[%s4 + $0x8] sm:$0xff]
      %vm502 = vcmask 392192
      %v504 = vsel %vm502, %v500, 0
      %v507 = vsel %vm502, %v501, 0
      %v509 = vand.u32 %v443, 4294901760
      %510 = vmatprep.subr.mxu0 %v509
      %v511 = vand.u32 %v442, 4294901760
      %512 = vmatpush1.msra.mxu0 %v511
      %v513 = vand.u32 %v463, 4294901760
      %514 = vmatprep.subr.mxu0 %v513
      %v515 = vand.u32 %v462, 4294901760
      %516 = vmatpush1.msra.mxu0 %v515
      %v517 = vand.u32 %v474, 4294901760
      %518 = vmatprep.subr.mxu0 %v517
      %v519 = vand.u32 %v473, 4294901760
      %520 = vmatpush1.msra.mxu0 %v519
      %v521 = vand.u32 %v448, 4294901760
      %522 = vmatprep.subr.mxu0 %v521
      %v523 = vand.u32 %v447, 4294901760
      %524 = vmatpush1.msra.mxu0 %v523
      %v525 = vand.u32 %v487, 4294901760
      %526 = vmatprep.subr.mxu0 %v525
      %v527 = vand.u32 %v486, 4294901760
      %528 = vmatpush1.msra.mxu0 %v527
      %v529 = vand.u32 %v497, 4294901760
      %530 = vmatprep.subr.mxu0 %v529
      %v531 = vand.u32 %v496, 4294901760
      %532 = vmatpush1.msra.mxu0 %v531
      %533 = vmatprep.subr.mxu0 0.0
      %534 = vmatpush1.msra.mxu0 0.0
      %535 = vmatprep.subr.mxu0 0.0
      %536 = vmatpush1.msra.mxu0 0.0
      %537 = vmatprep.subr.mxu0 0.0
      %538 = vmatpush1.msra.mxu0 0.0
      %539 = vmatprep.subr.mxu0 0.0
      %540 = vmatpush1.msra.mxu0 0.0
      %541 = vmatprep.subr.mxu0 0.0
      %542 = vmatpush1.msra.mxu0 0.0
      %543 = vmatprep.subr.mxu0 0.0
      %544 = vmatpush1.msra.mxu0 0.0
      %545 = vmatprep.subr.mxu0 0.0
      %546 = vmatpush1.msra.mxu0 0.0
      %547 = vmatprep.subr.mxu0 0.0
      %548 = vmatpush1.msra.mxu0 0.0
      %549 = vmatprep.subr.mxu0 0.0
      %550 = vmatpush1.msra.mxu0 0.0
      %551 = vmatprep.subr.mxu0 0.0
      %552 = vmatpush1.msra.mxu0 0.0
      %553 = vmatprep.subr.mxu0 0.0
      %554 = vmatpush1.msra.mxu0 0.0
      %555 = vmatprep.subr.mxu0 0.0
      %556 = vmatpush1.msra.mxu0 0.0
      %557 = vmatprep.subr.mxu0 0.0
      %558 = vmatpush1.msra.mxu0 0.0
      %559 = vmatprep.subr.mxu0 0.0
      %560 = vmatpush1.msra.mxu0 0.0
      %561 = vmatprep.subr.mxu0 0.0
      %562 = vmatpush1.msra.mxu0 0.0
      %563 = vmatprep.subr.mxu0 0.0
      %564 = vmatpush1.msra.mxu0 0.0
      %565 = vmatprep.subr.mxu0 0.0
      %566 = vmatpush1.msra.mxu0 0.0
      %567 = vmatprep.subr.mxu0 0.0
      %568 = vmatpush1.msra.mxu0 0.0
      %569 = vmatprep.subr.mxu0 0.0
      %570 = vmatpush1.msra.mxu0 0.0
      %571 = vmatprep.subr.mxu0 0.0
      %572 = vmatpush1.msra.mxu0 0.0
      %573 = vmatprep.subr.mxu0 0.0
      %574 = vmatpush1.msra.mxu0 0.0
      %575 = vmatprep.subr.mxu0 0.0
      %576 = vmatpush1.msra.mxu0 0.0
      %577 = vmatprep.subr.mxu0 0.0
      %578 = vmatpush1.msra.mxu0 0.0
      %579 = vmatprep.subr.mxu0 0.0
      %580 = vmatpush1.msra.mxu0 0.0
      %581 = vmatprep.subr.mxu0 0.0
      %582 = vmatpush1.msra.mxu0 0.0
      %583 = vmatprep.subr.mxu0 0.0
      %584 = vmatpush1.msra.mxu0 0.0
      %585 = vmatprep.mubr.f32.mxu0 0.0
      %v586 = vand.u32 %v504, 4294901760
      %v587 = vsub.f32 %v504, %v586
      %v588 = vand.u32 %v587, 4294901760
      %v589 = vsub.f32 %v587, %v588
      %v590 = vand.u32 %v589, 4294901760
      %591 = vmatmul.mubr.f32.gmra.mrb[0].mxu0 %v590
      %v592 = vpop.f32.mrb[0].mxu0
      %v593 = vadd.f32 0.0, %v592
      %v594 = vpop.f32.mrb[0].mxu0
      %v595 = vadd.f32 0.0, %v594
      %596 = vmatprep.mubr.f32.mxu0 0.0
      %v597 = vand.u32 %v507, 4294901760
      %v598 = vsub.f32 %v507, %v597
      %v599 = vand.u32 %v598, 4294901760
      %v600 = vsub.f32 %v598, %v599
      %v601 = vand.u32 %v600, 4294901760
      %602 = vmatmul.mubr.f32.gmra.mrb[0].mxu0 %v601
      %v603 = vpop.f32.mrb[0].mxu0
      %v604 = vadd.f32 0.0, %v603
      %v605 = vpop.f32.mrb[0].mxu0
      %v606 = vadd.f32 0.0, %v605
      %607 = vdwg.mxu0
      %v608 = vand.u32 %v443, 4294901760
      %v609 = vsub.f32 %v443, %v608
      %v610 = vand.u32 %v609, 4294901760
      %v611 = vsub.f32 %v609, %v610
      %v612 = vand.u32 %v611, 4294901760
      %613 = vmatprep.subr.mxu0 %v612
      %v614 = vand.u32 %v442, 4294901760
      %v615 = vsub.f32 %v442, %v614
      %v616 = vand.u32 %v615, 4294901760
      %v617 = vsub.f32 %v615, %v616
      %v618 = vand.u32 %v617, 4294901760
      %619 = vmatpush1.msra.mxu0 %v618
      %v620 = vand.u32 %v463, 4294901760
      %v621 = vsub.f32 %v463, %v620
      %v622 = vand.u32 %v621, 4294901760
      %v623 = vsub.f32 %v621, %v622
      %v624 = vand.u32 %v623, 4294901760
      %625 = vmatprep.subr.mxu0 %v624
      %v626 = vand.u32 %v462, 4294901760
      %v627 = vsub.f32 %v462, %v626
      %v628 = vand.u32 %v627, 4294901760
      %v629 = vsub.f32 %v627, %v628
      %v630 = vand.u32 %v629, 4294901760
      %631 = vmatpush1.msra.mxu0 %v630
      %v632 = vand.u32 %v474, 4294901760
      %v633 = vsub.f32 %v474, %v632
      %v634 = vand.u32 %v633, 4294901760
      %v635 = vsub.f32 %v633, %v634
      %v636 = vand.u32 %v635, 4294901760
      %637 = vmatprep.subr.mxu0 %v636
      %v638 = vand.u32 %v473, 4294901760
      %v639 = vsub.f32 %v473, %v638
      %v640 = vand.u32 %v639, 4294901760
      %v641 = vsub.f32 %v639, %v640
      %v642 = vand.u32 %v641, 4294901760
      %643 = vmatpush1.msra.mxu0 %v642
      %v644 = vand.u32 %v448, 4294901760
      %v645 = vsub.f32 %v448, %v644
      %v646 = vand.u32 %v645, 4294901760
      %v647 = vsub.f32 %v645, %v646
      %v648 = vand.u32 %v647, 4294901760
      %649 = vmatprep.subr.mxu0 %v648
      %v650 = vand.u32 %v447, 4294901760
      %v651 = vsub.f32 %v447, %v650
      %v652 = vand.u32 %v651, 4294901760
      %v653 = vsub.f32 %v651, %v652
      %v654 = vand.u32 %v653, 4294901760
      %655 = vmatpush1.msra.mxu0 %v654
      %v656 = vand.u32 %v487, 4294901760
      %v657 = vsub.f32 %v487, %v656
      %v658 = vand.u32 %v657, 4294901760
      %v659 = vsub.f32 %v657, %v658
      %v660 = vand.u32 %v659, 4294901760
      %661 = vmatprep.subr.mxu0 %v660
      %v662 = vand.u32 %v486, 4294901760
      %v663 = vsub.f32 %v486, %v662
      %v664 = vand.u32 %v663, 4294901760
      %v665 = vsub.f32 %v663, %v664
      %v666 = vand.u32 %v665, 4294901760
      %667 = vmatpush1.msra.mxu0 %v666
      %v668 = vand.u32 %v497, 4294901760
      %v669 = vsub.f32 %v497, %v668
      %v670 = vand.u32 %v669, 4294901760
      %v671 = vsub.f32 %v669, %v670
      %v672 = vand.u32 %v671, 4294901760
      %673 = vmatprep.subr.mxu0 %v672
      %v674 = vand.u32 %v496, 4294901760
      %v675 = vsub.f32 %v496, %v674
      %v676 = vand.u32 %v675, 4294901760
      %v677 = vsub.f32 %v675, %v676
      %v678 = vand.u32 %v677, 4294901760
      %679 = vmatpush1.msra.mxu0 %v678
      %680 = vmatprep.subr.mxu0 0.0
      %681 = vmatpush1.msra.mxu0 0.0
      %682 = vmatprep.subr.mxu0 0.0
      %683 = vmatpush1.msra.mxu0 0.0
      %684 = vmatprep.subr.mxu0 0.0
      %685 = vmatpush1.msra.mxu0 0.0
      %686 = vmatprep.subr.mxu0 0.0
      %687 = vmatpush1.msra.mxu0 0.0
      %688 = vmatprep.subr.mxu0 0.0
      %689 = vmatpush1.msra.mxu0 0.0
      %690 = vmatprep.subr.mxu0 0.0
      %691 = vmatpush1.msra.mxu0 0.0
      %692 = vmatprep.subr.mxu0 0.0
      %693 = vmatpush1.msra.mxu0 0.0
      %694 = vmatprep.subr.mxu0 0.0
      %695 = vmatpush1.msra.mxu0 0.0
      %696 = vmatprep.subr.mxu0 0.0
      %697 = vmatpush1.msra.mxu0 0.0
      %698 = vmatprep.subr.mxu0 0.0
      %699 = vmatpush1.msra.mxu0 0.0
      %700 = vmatprep.subr.mxu0 0.0
      %701 = vmatpush1.msra.mxu0 0.0
      %702 = vmatprep.subr.mxu0 0.0
      %703 = vmatpush1.msra.mxu0 0.0
      %704 = vmatprep.subr.mxu0 0.0
      %705 = vmatpush1.msra.mxu0 0.0
      %706 = vmatprep.subr.mxu0 0.0
      %707 = vmatpush1.msra.mxu0 0.0
      %708 = vmatprep.subr.mxu0 0.0
      %709 = vmatpush1.msra.mxu0 0.0
      %710 = vmatprep.subr.mxu0 0.0
      %711 = vmatpush1.msra.mxu0 0.0
      %712 = vmatprep.subr.mxu0 0.0
      %713 = vmatpush1.msra.mxu0 0.0
      %714 = vmatprep.subr.mxu0 0.0
      %715 = vmatpush1.msra.mxu0 0.0
      %716 = vmatprep.subr.mxu0 0.0
      %717 = vmatpush1.msra.mxu0 0.0
      %718 = vmatprep.subr.mxu0 0.0
      %719 = vmatpush1.msra.mxu0 0.0
      %720 = vmatprep.subr.mxu0 0.0
      %721 = vmatpush1.msra.mxu0 0.0
      %722 = vmatprep.subr.mxu0 0.0
      %723 = vmatpush1.msra.mxu0 0.0
      %724 = vmatprep.subr.mxu0 0.0
      %725 = vmatpush1.msra.mxu0 0.0
      %726 = vmatprep.subr.mxu0 0.0
      %727 = vmatpush1.msra.mxu0 0.0
      %728 = vmatprep.subr.mxu0 0.0
      %729 = vmatpush1.msra.mxu0 0.0
      %730 = vmatprep.subr.mxu0 0.0
      %731 = vmatpush1.msra.mxu0 0.0
      %732 = vmatprep.mubr.f32.mxu0 0.0
      %v733 = vand.u32 %v504, 4294901760
      %734 = vmatmul.mubr.f32.gmra.mrb[0].mxu0 %v733
      %v735 = vpop.f32.mrb[0].mxu0
      %v736 = vadd.f32 %v593, %v735
      %v737 = vpop.f32.mrb[0].mxu0
      %v738 = vadd.f32 %v595, %v737
      %739 = vmatprep.mubr.f32.mxu0 0.0
      %v740 = vand.u32 %v507, 4294901760
      %741 = vmatmul.mubr.f32.gmra.mrb[0].mxu0 %v740
      %v742 = vpop.f32.mrb[0].mxu0
      %v743 = vadd.f32 %v604, %v742
      %v744 = vpop.f32.mrb[0].mxu0
      %v745 = vadd.f32 %v606, %v744
      %746 = vdwg.mxu0
      %v747 = vand.u32 %v443, 4294901760
      %v748 = vsub.f32 %v443, %v747
      %749 = vmatprep.subr.mxu0 %v748
      %v750 = vand.u32 %v442, 4294901760
      %v751 = vsub.f32 %v442, %v750
      %752 = vmatpush1.msra.mxu0 %v751
      %v753 = vand.u32 %v463, 4294901760
      %v754 = vsub.f32 %v463, %v753
      %755 = vmatprep.subr.mxu0 %v754
      %v756 = vand.u32 %v462, 4294901760
      %v757 = vsub.f32 %v462, %v756
      %758 = vmatpush1.msra.mxu0 %v757
      %v759 = vand.u32 %v474, 4294901760
      %v760 = vsub.f32 %v474, %v759
      %761 = vmatprep.subr.mxu0 %v760
      %v762 = vand.u32 %v473, 4294901760
      %v763 = vsub.f32 %v473, %v762
      %764 = vmatpush1.msra.mxu0 %v763
      %v765 = vand.u32 %v448, 4294901760
      %v766 = vsub.f32 %v448, %v765
      %767 = vmatprep.subr.mxu0 %v766
      %v768 = vand.u32 %v447, 4294901760
      %v769 = vsub.f32 %v447, %v768
      %770 = vmatpush1.msra.mxu0 %v769
      %v771 = vand.u32 %v487, 4294901760
      %v772 = vsub.f32 %v487, %v771
      %773 = vmatprep.subr.mxu0 %v772
      %v774 = vand.u32 %v486, 4294901760
      %v775 = vsub.f32 %v486, %v774
      %776 = vmatpush1.msra.mxu0 %v775
      %v777 = vand.u32 %v497, 4294901760
      %v778 = vsub.f32 %v497, %v777
      %779 = vmatprep.subr.mxu0 %v778
      %v780 = vand.u32 %v496, 4294901760
      %v781 = vsub.f32 %v496, %v780
      %782 = vmatpush1.msra.mxu0 %v781
      %783 = vmatprep.subr.mxu0 0.0
      %784 = vmatpush1.msra.mxu0 0.0
      %785 = vmatprep.subr.mxu0 0.0
      %786 = vmatpush1.msra.mxu0 0.0
      %787 = vmatprep.subr.mxu0 0.0
      %788 = vmatpush1.msra.mxu0 0.0
      %789 = vmatprep.subr.mxu0 0.0
      %790 = vmatpush1.msra.mxu0 0.0
      %791 = vmatprep.subr.mxu0 0.0
      %792 = vmatpush1.msra.mxu0 0.0
      %793 = vmatprep.subr.mxu0 0.0
      %794 = vmatpush1.msra.mxu0 0.0
      %795 = vmatprep.subr.mxu0 0.0
      %796 = vmatpush1.msra.mxu0 0.0
      %797 = vmatprep.subr.mxu0 0.0
      %798 = vmatpush1.msra.mxu0 0.0
      %799 = vmatprep.subr.mxu0 0.0
      %800 = vmatpush1.msra.mxu0 0.0
      %801 = vmatprep.subr.mxu0 0.0
      %802 = vmatpush1.msra.mxu0 0.0
      %803 = vmatprep.subr.mxu0 0.0
      %804 = vmatpush1.msra.mxu0 0.0
      %805 = vmatprep.subr.mxu0 0.0
      %806 = vmatpush1.msra.mxu0 0.0
      %807 = vmatprep.subr.mxu0 0.0
      %808 = vmatpush1.msra.mxu0 0.0
      %809 = vmatprep.subr.mxu0 0.0
      %810 = vmatpush1.msra.mxu0 0.0
      %811 = vmatprep.subr.mxu0 0.0
      %812 = vmatpush1.msra.mxu0 0.0
      %813 = vmatprep.subr.mxu0 0.0
      %814 = vmatpush1.msra.mxu0 0.0
      %815 = vmatprep.subr.mxu0 0.0
      %816 = vmatpush1.msra.mxu0 0.0
      %817 = vmatprep.subr.mxu0 0.0
      %818 = vmatpush1.msra.mxu0 0.0
      %819 = vmatprep.subr.mxu0 0.0
      %820 = vmatpush1.msra.mxu0 0.0
      %821 = vmatprep.subr.mxu0 0.0
      %822 = vmatpush1.msra.mxu0 0.0
      %823 = vmatprep.subr.mxu0 0.0
      %824 = vmatpush1.msra.mxu0 0.0
      %825 = vmatprep.subr.mxu0 0.0
      %826 = vmatpush1.msra.mxu0 0.0
      %827 = vmatprep.subr.mxu0 0.0
      %828 = vmatpush1.msra.mxu0 0.0
      %829 = vmatprep.subr.mxu0 0.0
      %830 = vmatpush1.msra.mxu0 0.0
      %831 = vmatprep.subr.mxu0 0.0
      %832 = vmatpush1.msra.mxu0 0.0
      %833 = vmatprep.subr.mxu0 0.0
      %834 = vmatpush1.msra.mxu0 0.0
      %835 = vmatprep.mubr.f32.mxu0 0.0
      %v836 = vand.u32 %v504, 4294901760
      %v837 = vsub.f32 %v504, %v836
      %838 = vmatmul.mubr.f32.gmra.mrb[0].mxu0 %v837
      %v839 = vpop.f32.mrb[0].mxu0
      %v840 = vadd.f32 %v736, %v839
      %v841 = vpop.f32.mrb[0].mxu0
      %v842 = vadd.f32 %v738, %v841
      %843 = vmatprep.mubr.f32.mxu0 0.0
      %v844 = vand.u32 %v507, 4294901760
      %v845 = vsub.f32 %v507, %v844
      %846 = vmatmul.mubr.f32.gmra.mrb[0].mxu0 %v845
      %v847 = vpop.f32.mrb[0].mxu0
      %v848 = vadd.f32 %v743, %v847
      %v849 = vpop.f32.mrb[0].mxu0
      %v850 = vadd.f32 %v745, %v849
      %851 = vdwg.mxu0
      %v852 = vand.u32 %v443, 4294901760
      %853 = vmatprep.subr.mxu0 %v852
      %v854 = vand.u32 %v442, 4294901760
      %855 = vmatpush1.msra.mxu0 %v854
      %v856 = vand.u32 %v463, 4294901760
      %857 = vmatprep.subr.mxu0 %v856
      %v858 = vand.u32 %v462, 4294901760
      %859 = vmatpush1.msra.mxu0 %v858
      %v860 = vand.u32 %v474, 4294901760
      %861 = vmatprep.subr.mxu0 %v860
      %v862 = vand.u32 %v473, 4294901760
      %863 = vmatpush1.msra.mxu0 %v862
      %v864 = vand.u32 %v448, 4294901760
      %865 = vmatprep.subr.mxu0 %v864
      %v866 = vand.u32 %v447, 4294901760
      %867 = vmatpush1.msra.mxu0 %v866
      %v868 = vand.u32 %v487, 4294901760
      %869 = vmatprep.subr.mxu0 %v868
      %v870 = vand.u32 %v486, 4294901760
      %871 = vmatpush1.msra.mxu0 %v870
      %v872 = vand.u32 %v497, 4294901760
      %873 = vmatprep.subr.mxu0 %v872
      %v874 = vand.u32 %v496, 4294901760
      %875 = vmatpush1.msra.mxu0 %v874
      %876 = vmatprep.subr.mxu0 0.0
      %877 = vmatpush1.msra.mxu0 0.0
      %878 = vmatprep.subr.mxu0 0.0
      %879 = vmatpush1.msra.mxu0 0.0
      %880 = vmatprep.subr.mxu0 0.0
      %881 = vmatpush1.msra.mxu0 0.0
      %882 = vmatprep.subr.mxu0 0.0
      %883 = vmatpush1.msra.mxu0 0.0
      %884 = vmatprep.subr.mxu0 0.0
      %885 = vmatpush1.msra.mxu0 0.0
      %886 = vmatprep.subr.mxu0 0.0
      %887 = vmatpush1.msra.mxu0 0.0
      %888 = vmatprep.subr.mxu0 0.0
      %889 = vmatpush1.msra.mxu0 0.0
      %890 = vmatprep.subr.mxu0 0.0
      %891 = vmatpush1.msra.mxu0 0.0
      %892 = vmatprep.subr.mxu0 0.0
      %893 = vmatpush1.msra.mxu0 0.0
      %894 = vmatprep.subr.mxu0 0.0
      %895 = vmatpush1.msra.mxu0 0.0
      %896 = vmatprep.subr.mxu0 0.0
      %897 = vmatpush1.msra.mxu0 0.0
      %898 = vmatprep.subr.mxu0 0.0
      %899 = vmatpush1.msra.mxu0 0.0
      %900 = vmatprep.subr.mxu0 0.0
      %901 = vmatpush1.msra.mxu0 0.0
      %902 = vmatprep.subr.mxu0 0.0
      %903 = vmatpush1.msra.mxu0 0.0
      %904 = vmatprep.subr.mxu0 0.0
      %905 = vmatpush1.msra.mxu0 0.0
      %906 = vmatprep.subr.mxu0 0.0
      %907 = vmatpush1.msra.mxu0 0.0
      %908 = vmatprep.subr.mxu0 0.0
      %909 = vmatpush1.msra.mxu0 0.0
      %910 = vmatprep.subr.mxu0 0.0
      %911 = vmatpush1.msra.mxu0 0.0
      %912 = vmatprep.subr.mxu0 0.0
      %913 = vmatpush1.msra.mxu0 0.0
      %914 = vmatprep.subr.mxu0 0.0
      %915 = vmatpush1.msra.mxu0 0.0
      %916 = vmatprep.subr.mxu0 0.0
      %917 = vmatpush1.msra.mxu0 0.0
      %918 = vmatprep.subr.mxu0 0.0
      %919 = vmatpush1.msra.mxu0 0.0
      %920 = vmatprep.subr.mxu0 0.0
      %921 = vmatpush1.msra.mxu0 0.0
      %922 = vmatprep.subr.mxu0 0.0
      %923 = vmatpush1.msra.mxu0 0.0
      %924 = vmatprep.subr.mxu0 0.0
      %925 = vmatpush1.msra.mxu0 0.0
      %926 = vmatprep.subr.mxu0 0.0
      %927 = vmatpush1.msra.mxu0 0.0
      %928 = vmatprep.mubr.f32.mxu0 0.0
      %v929 = vand.u32 %v504, 4294901760
      %v930 = vsub.f32 %v504, %v929
      %v931 = vand.u32 %v930, 4294901760
      %932 = vmatmul.mubr.f32.gmra.mrb[0].mxu0 %v931
      %v933 = vpop.f32.mrb[0].mxu0
      %v934 = vadd.f32 %v840, %v933
      %v935 = vpop.f32.mrb[0].mxu0
      %v936 = vadd.f32 %v842, %v935
      %937 = vmatprep.mubr.f32.mxu0 0.0
      %v938 = vand.u32 %v507, 4294901760
      %v939 = vsub.f32 %v507, %v938
      %v940 = vand.u32 %v939, 4294901760
      %941 = vmatmul.mubr.f32.gmra.mrb[0].mxu0 %v940
      %v942 = vpop.f32.mrb[0].mxu0
      %v943 = vadd.f32 %v848, %v942
      %v944 = vpop.f32.mrb[0].mxu0
      %v945 = vadd.f32 %v850, %v944
      %946 = vdwg.mxu0
      %v947 = vand.u32 %v443, 4294901760
      %v948 = vsub.f32 %v443, %v947
      %v949 = vand.u32 %v948, 4294901760
      %950 = vmatprep.subr.mxu0 %v949
      %v951 = vand.u32 %v442, 4294901760
      %v952 = vsub.f32 %v442, %v951
      %v953 = vand.u32 %v952, 4294901760
      %954 = vmatpush1.msra.mxu0 %v953
      %v955 = vand.u32 %v463, 4294901760
      %v956 = vsub.f32 %v463, %v955
      %v957 = vand.u32 %v956, 4294901760
      %958 = vmatprep.subr.mxu0 %v957
      %v959 = vand.u32 %v462, 4294901760
      %v960 = vsub.f32 %v462, %v959
      %v961 = vand.u32 %v960, 4294901760
      %962 = vmatpush1.msra.mxu0 %v961
      %v963 = vand.u32 %v474, 4294901760
      %v964 = vsub.f32 %v474, %v963
      %v965 = vand.u32 %v964, 4294901760
      %966 = vmatprep.subr.mxu0 %v965
      %v967 = vand.u32 %v473, 4294901760
      %v968 = vsub.f32 %v473, %v967
      %v969 = vand.u32 %v968, 4294901760
      %970 = vmatpush1.msra.mxu0 %v969
      %v971 = vand.u32 %v448, 4294901760
      %v972 = vsub.f32 %v448, %v971
      %v973 = vand.u32 %v972, 4294901760
      %974 = vmatprep.subr.mxu0 %v973
      %v975 = vand.u32 %v447, 4294901760
      %v976 = vsub.f32 %v447, %v975
      %v977 = vand.u32 %v976, 4294901760
      %978 = vmatpush1.msra.mxu0 %v977
      %v979 = vand.u32 %v487, 4294901760
      %v980 = vsub.f32 %v487, %v979
      %v981 = vand.u32 %v980, 4294901760
      %982 = vmatprep.subr.mxu0 %v981
      %v983 = vand.u32 %v486, 4294901760
      %v984 = vsub.f32 %v486, %v983
      %v985 = vand.u32 %v984, 4294901760
      %986 = vmatpush1.msra.mxu0 %v985
      %v987 = vand.u32 %v497, 4294901760
      %v988 = vsub.f32 %v497, %v987
      %v989 = vand.u32 %v988, 4294901760
      %990 = vmatprep.subr.mxu0 %v989
      %v991 = vand.u32 %v496, 4294901760
      %v992 = vsub.f32 %v496, %v991
      %v993 = vand.u32 %v992, 4294901760
      %994 = vmatpush1.msra.mxu0 %v993
      %995 = vmatprep.subr.mxu0 0.0
      %996 = vmatpush1.msra.mxu0 0.0
      %997 = vmatprep.subr.mxu0 0.0
      %998 = vmatpush1.msra.mxu0 0.0
      %999 = vmatprep.subr.mxu0 0.0
      %1000 = vmatpush1.msra.mxu0 0.0
      %1001 = vmatprep.subr.mxu0 0.0
      %1002 = vmatpush1.msra.mxu0 0.0
      %1003 = vmatprep.subr.mxu0 0.0
      %1004 = vmatpush1.msra.mxu0 0.0
      %1005 = vmatprep.subr.mxu0 0.0
      %1006 = vmatpush1.msra.mxu0 0.0
      %1007 = vmatprep.subr.mxu0 0.0
      %1008 = vmatpush1.msra.mxu0 0.0
      %1009 = vmatprep.subr.mxu0 0.0
      %1010 = vmatpush1.msra.mxu0 0.0
      %1011 = vmatprep.subr.mxu0 0.0
      %1012 = vmatpush1.msra.mxu0 0.0
      %1013 = vmatprep.subr.mxu0 0.0
      %1014 = vmatpush1.msra.mxu0 0.0
      %1015 = vmatprep.subr.mxu0 0.0
      %1016 = vmatpush1.msra.mxu0 0.0
      %1017 = vmatprep.subr.mxu0 0.0
      %1018 = vmatpush1.msra.mxu0 0.0
      %1019 = vmatprep.subr.mxu0 0.0
      %1020 = vmatpush1.msra.mxu0 0.0
      %1021 = vmatprep.subr.mxu0 0.0
      %1022 = vmatpush1.msra.mxu0 0.0
      %1023 = vmatprep.subr.mxu0 0.0
      %1024 = vmatpush1.msra.mxu0 0.0
      %1025 = vmatprep.subr.mxu0 0.0
      %1026 = vmatpush1.msra.mxu0 0.0
      %1027 = vmatprep.subr.mxu0 0.0
      %1028 = vmatpush1.msra.mxu0 0.0
      %1029 = vmatprep.subr.mxu0 0.0
      %1030 = vmatpush1.msra.mxu0 0.0
      %1031 = vmatprep.subr.mxu0 0.0
      %1032 = vmatpush1.msra.mxu0 0.0
      %1033 = vmatprep.subr.mxu0 0.0
      %1034 = vmatpush1.msra.mxu0 0.0
      %1035 = vmatprep.subr.mxu0 0.0
      %1036 = vmatpush1.msra.mxu0 0.0
      %1037 = vmatprep.subr.mxu0 0.0
      %1038 = vmatpush1.msra.mxu0 0.0
      %1039 = vmatprep.subr.mxu0 0.0
      %1040 = vmatpush1.msra.mxu0 0.0
      %1041 = vmatprep.subr.mxu0 0.0
      %1042 = vmatpush1.msra.mxu0 0.0
      %1043 = vmatprep.subr.mxu0 0.0
      %1044 = vmatpush1.msra.mxu0 0.0
      %1045 = vmatprep.subr.mxu0 0.0
      %1046 = vmatpush1.msra.mxu0 0.0
      %1047 = vmatprep.mubr.f32.mxu0 0.0
      %v1048 = vand.u32 %v504, 4294901760
      %1049 = vmatmul.mubr.f32.gmra.mrb[0].mxu0 %v1048
      %v1050 = vpop.f32.mrb[0].mxu0
      %v1051 = vadd.f32 %v934, %v1050
      %v1052 = vpop.f32.mrb[0].mxu0
      %v1053 = vadd.f32 %v936, %v1052
      %1054 = vmatprep.mubr.f32.mxu0 0.0
      %v1055 = vand.u32 %v507, 4294901760
      %1056 = vmatmul.mubr.f32.gmra.mrb[0].mxu0 %v1055
      %v1057 = vpop.f32.mrb[0].mxu0
      %v1058 = vadd.f32 %v943, %v1057
      %v1059 = vpop.f32.mrb[0].mxu0
      %v1060 = vadd.f32 %v945, %v1059
      %1061 = vdwg.mxu0
      %v1062 = vand.u32 %v443, 4294901760
      %1063 = vmatprep.subr.mxu0 %v1062
      %v1064 = vand.u32 %v442, 4294901760
      %1065 = vmatpush1.msra.mxu0 %v1064
      %v1066 = vand.u32 %v463, 4294901760
      %1067 = vmatprep.subr.mxu0 %v1066
      %v1068 = vand.u32 %v462, 4294901760
      %1069 = vmatpush1.msra.mxu0 %v1068
      %v1070 = vand.u32 %v474, 4294901760
      %1071 = vmatprep.subr.mxu0 %v1070
      %v1072 = vand.u32 %v473, 4294901760
      %1073 = vmatpush1.msra.mxu0 %v1072
      %v1074 = vand.u32 %v448, 4294901760
      %1075 = vmatprep.subr.mxu0 %v1074
      %v1076 = vand.u32 %v447, 4294901760
      %1077 = vmatpush1.msra.mxu0 %v1076
      %v1078 = vand.u32 %v487, 4294901760
      %1079 = vmatprep.subr.mxu0 %v1078
      %v1080 = vand.u32 %v486, 4294901760
      %1081 = vmatpush1.msra.mxu0 %v1080
      %v1082 = vand.u32 %v497, 4294901760
      %1083 = vmatprep.subr.mxu0 %v1082
      %v1084 = vand.u32 %v496, 4294901760
      %1085 = vmatpush1.msra.mxu0 %v1084
      %1086 = vmatprep.subr.mxu0 0.0
      %1087 = vmatpush1.msra.mxu0 0.0
      %1088 = vmatprep.subr.mxu0 0.0
      %1089 = vmatpush1.msra.mxu0 0.0
      %1090 = vmatprep.subr.mxu0 0.0
      %1091 = vmatpush1.msra.mxu0 0.0
      %1092 = vmatprep.subr.mxu0 0.0
      %1093 = vmatpush1.msra.mxu0 0.0
      %1094 = vmatprep.subr.mxu0 0.0
      %1095 = vmatpush1.msra.mxu0 0.0
      %1096 = vmatprep.subr.mxu0 0.0
      %1097 = vmatpush1.msra.mxu0 0.0
      %1098 = vmatprep.subr.mxu0 0.0
      %1099 = vmatpush1.msra.mxu0 0.0
      %1100 = vmatprep.subr.mxu0 0.0
      %1101 = vmatpush1.msra.mxu0 0.0
      %1102 = vmatprep.subr.mxu0 0.0
      %1103 = vmatpush1.msra.mxu0 0.0
      %1104 = vmatprep.subr.mxu0 0.0
      %1105 = vmatpush1.msra.mxu0 0.0
      %1106 = vmatprep.subr.mxu0 0.0
      %1107 = vmatpush1.msra.mxu0 0.0
      %1108 = vmatprep.subr.mxu0 0.0
      %1109 = vmatpush1.msra.mxu0 0.0
      %1110 = vmatprep.subr.mxu0 0.0
      %1111 = vmatpush1.msra.mxu0 0.0
      %1112 = vmatprep.subr.mxu0 0.0
      %1113 = vmatpush1.msra.mxu0 0.0
      %1114 = vmatprep.subr.mxu0 0.0
      %1115 = vmatpush1.msra.mxu0 0.0
      %1116 = vmatprep.subr.mxu0 0.0
      %1117 = vmatpush1.msra.mxu0 0.0
      %1118 = vmatprep.subr.mxu0 0.0
      %1119 = vmatpush1.msra.mxu0 0.0
      %1120 = vmatprep.subr.mxu0 0.0
      %1121 = vmatpush1.msra.mxu0 0.0
      %1122 = vmatprep.subr.mxu0 0.0
      %1123 = vmatpush1.msra.mxu0 0.0
      %1124 = vmatprep.subr.mxu0 0.0
      %1125 = vmatpush1.msra.mxu0 0.0
      %1126 = vmatprep.subr.mxu0 0.0
      %1127 = vmatpush1.msra.mxu0 0.0
      %1128 = vmatprep.subr.mxu0 0.0
      %1129 = vmatpush1.msra.mxu0 0.0
      %1130 = vmatprep.subr.mxu0 0.0
      %1131 = vmatpush1.msra.mxu0 0.0
      %1132 = vmatprep.subr.mxu0 0.0
      %1133 = vmatpush1.msra.mxu0 0.0
      %1134 = vmatprep.subr.mxu0 0.0
      %1135 = vmatpush1.msra.mxu0 0.0
      %1136 = vmatprep.subr.mxu0 0.0
      %1137 = vmatpush1.msra.mxu0 0.0
      %1138 = vmatprep.mubr.f32.mxu0 0.0
      %v1139 = vand.u32 %v504, 4294901760
      %1140 = vmatmul.mubr.f32.gmra.mrb[0].mxu0 %v1139
      %v1141 = vpop.f32.mrb[0].mxu0
      %v1142 = vadd.f32 %v1051, %v1141
      %v1143 = vpop.f32.mrb[0].mxu0
      %v1144 = vadd.f32 %v1053, %v1143
      %1145 = vmatprep.mubr.f32.mxu0 0.0
      %v1146 = vand.u32 %v507, 4294901760
      %1147 = vmatmul.mubr.f32.gmra.mrb[0].mxu0 %v1146
      %v1148 = vpop.f32.mrb[0].mxu0
      %v1149 = vadd.f32 %v1058, %v1148
      %v1150 = vpop.f32.mrb[0].mxu0
      %v1151 = vadd.f32 %v1060, %v1150
      %1152 = vdwg.mxu0
      %1153 = vst [vmem:[%s428] sm:$0xff] %v1142
      %1154 = vst [vmem:[%s428 + $0x8] sm:$0xff] %v1144
      %1155 = vst [vmem:[%s428 + $0x10] sm:$0xff] %v1149
      %1156 = vst [vmem:[%s428 + $0x18] sm:$0xff] %v1151
      %s1157 = smul.u32 2, %s21
      %p1158 = scmp.lt.s32.totalorder %s20, 1
      %s1159 = scalar_select %p1158, %s20, 1
      %p1160 = scmp.lt.s32.totalorder %s1157, 1
      %s1161 = scalar_select %p1160, %s1157, 1
      %s1162 = smul.addr %s1159, 4
      %s1163 = sadd.s32 %s1161, %s1162
      %s1164 = smul.addr %s1163, 8
      %s1165 = scalar_lea.vmem %s5, %s1164
      // Predicated region
      $region41: #{slow_complex_conv1d.1} parent=39 // pred_check
        %p1166 = pneg %p189
      $region42: #{slow_complex_conv1d.1} parent=39 // pred_check_branch
        %1168 = sbr.rel (%p1166) target = $region44
      $region43: #{slow_complex_conv1d.1} parent=39 // pred_region
        %s1169 = smul.u32 2, %s21
      $region44: #{slow_complex_conv1d.1} parent=39 // pred_fallthru
        _
    $region40: #{slow_complex_conv1d.1} parent=5 // pred_fallthru
      _
    %p1170 = scmp.le.s32.totalorder 2, %s11
    // Predicated region
    $region45: #{slow_complex_conv1d.1} parent=5 // pred_check
      %p1171 = pneg %p1170
    $region46: #{slow_complex_conv1d.1} parent=5 // pred_check_branch
      %1173 = sbr.rel (%p1171) target = $region48
    $region47: #{slow_complex_conv1d.1} parent=5 // pred_region
      %s1174 = ssub.s32 %s11, 2
      // Predicated region
      $region49: #{slow_complex_conv1d.1} parent=47 // pred_check
        %p1175 = pneg %p195
      $region50: #{slow_complex_conv1d.1} parent=47 // pred_check_branch
        %1177 = sbr.rel (%p1175) target = $region52
      $region51: #{slow_complex_conv1d.1} parent=47 // pred_region
        %s1178 = smul.u32 2, %s23
        %p1179 = scmp.lt.s32.totalorder %s22, 1
        %s1180 = scalar_select %p1179, %s22, 1
        %p1181 = scmp.lt.s32.totalorder %s1178, 1
        %s1182 = scalar_select %p1181, %s1178, 1
        %s1183 = smul.addr %s1180, 4
        %s1184 = sadd.s32 %s1182, %s1183
        %s1185 = smul.addr %s1184, 8
        %s1186 = scalar_lea.vmem %s5, %s1185
      $region52: #{slow_complex_conv1d.1} parent=47 // pred_fallthru
        _
    $region48: #{slow_complex_conv1d.1} parent=5 // pred_fallthru
      _
  $region6: #{slow_complex_conv1d.1} parent=0 // loop_footer
    %s15 = sadd.s32 1, %s11
  $region7: #{slow_complex_conv1d.1} parent=0 // loop_footer_branch
    %10 = sbr.rel target = $region3
  $region8: #{slow_complex_conv1d.1} parent=0 // loop_exit
    _

</llo_original>
